<compile_context>
chip_gen: v5e
topology: v5e:2x2
jax: 0.10.0
libtpu: 0.0.40
codegen_flags: <defaults>
</compile_context>

<pallas_src>
import jax
import jax.numpy as jnp
from jax.experimental import pallas as pl
from jax.experimental.pallas import tpu as pltpu


def crossen_kernel(rows_ref, diag_ref, out_ref, acc_ref):
    """Grid = (n_par, steps).  Each step processes a (TM, N) row block plus the
    matching (TM, TM) diagonal window of the same rows.

    For each row r in the block:
        -logpt[r] = logsumexp(row) - diag(row)
    Accumulated elementwise into a resident (TM, 1) accumulator; the partial
    sum for partition p is written once at the last reduction step.
    """
    i = pl.program_id(1)

    @pl.when(i == 0)
    def _init():
        acc_ref[...] = jnp.zeros_like(acc_ref)

    x = rows_ref[...].astype(jnp.float32)                 # (TM, N)

    # Numerically-stable log-softmax denominator per row.
    m = jnp.max(x, axis=-1, keepdims=True)                               # (TM, 1)
    lse = jnp.log(jnp.sum(jnp.exp(x - m), axis=-1, keepdims=True)) + m   # (TM, 1)

    # Diagonal entries: the (TM, TM) window already starts at column g*TM, so
    # the wanted elements sit on its local diagonal.  Mask over TM lanes only.
    d = diag_ref[...].astype(jnp.float32)                 # (TM, TM)
    tm = d.shape[0]
    r = jax.lax.broadcasted_iota(jnp.int32, (tm, tm), 0)
    c = jax.lax.broadcasted_iota(jnp.int32, (tm, tm), 1)
    diag = jnp.sum(jnp.where(r == c, d, 0.0), axis=-1, keepdims=True)    # (TM, 1)

    acc_ref[...] += lse - diag                            # sum of -logpt per row

    @pl.when(i == pl.num_programs(1) - 1)
    def _finalize():
        # Single cross-sublane reduce, broadcast into the (8, 128) output slab.
        out_ref[...] = jnp.zeros_like(out_ref) + jnp.sum(acc_ref[...])


def _plan(n_rows, n_cols, vmem_budget_bytes):
    """Pick (n_par, tm).

    tm must (a) divide the rows of each partition, (b) keep the double-buffered
    (tm, N) f32 input block within the VMEM budget, and (c) satisfy Mosaic tile
    constraints: tm % 8 == 0 for the (tm, N) block and tm % 128 == 0 (or
    tm == N) for the (tm, tm) diagonal block.
    """
    tm_cap = max(1, vmem_budget_bytes // (2 * n_cols * 4))
    tm_cap = min(tm_cap, 1024)

    candidates = []
    for n_par in (1, 2):
        if n_rows % n_par:
            continue
        rpp = n_rows // n_par
        best_tm = None
        for tm in range(min(rpp, tm_cap), 0, -1):
            if rpp % tm:
                continue
            ok_rows = (tm % 8 == 0) or (tm == n_rows)
            ok_diag = (tm % 128 == 0) or (tm == n_cols)
            if ok_rows and ok_diag:
                best_tm = tm
                break
        if best_tm is not None:
            candidates.append((best_tm, n_par))

    if not candidates:
        # Fallback: one program over the whole matrix (always layout-legal
        # since the block equals the full array dims).
        return 1, n_rows

    by_par = {p: t for (t, p) in candidates}
    # Prefer the 2-partition (megacore) plan once its tile is big enough to
    # amortize per-step overhead; otherwise take the biggest tile.
    if 2 in by_par and by_par[2] >= 256:
        return 2, by_par[2]
    best_tm, n_par = max(candidates)
    return n_par, best_tm


def cross_en(sim_matrix: jax.Array, *, vmem_budget_bytes: int = 32 << 20) -> jax.Array:
    """Pallas implementation of CrossEn.forward. Returns a scalar float32."""
    n_rows, n_cols = sim_matrix.shape
    assert n_rows == n_cols, "CrossEn expects a square similarity matrix"

    n_par, tm = _plan(n_rows, n_cols, vmem_budget_bytes)
    steps = (n_rows // n_par) // tm
    assert n_par * steps * tm == n_rows

    # Double-buffered row block + diag block + accumulator + output + headroom.
    est_vmem = 2 * tm * n_cols * 4 + 2 * tm * tm * 4 + tm * 128 * 4 + 2 * 8 * 128 * 4
    vmem_limit = int(min(56 << 20, max(32 << 20, est_vmem + (8 << 20))))

    out = pl.pallas_call(
        crossen_kernel,
        out_shape=jax.ShapeDtypeStruct((n_par * 8, 128), jnp.float32),
        grid_spec=pltpu.PrefetchScalarGridSpec(
            num_scalar_prefetch=0,
            grid=(n_par, steps),
            in_specs=[
                # Full-width row block for the logsumexp.
                pl.BlockSpec((tm, n_cols), lambda p, i: (p * steps + i, 0)),
                # (tm, tm) window containing the diagonal of those rows.
                pl.BlockSpec((tm, tm), lambda p, i: (p * steps + i, p * steps + i)),
            ],
            out_specs=pl.BlockSpec((8, 128), lambda p, i: (p, 0)),
            scratch_shapes=[pltpu.VMEM((tm, 1), jnp.float32)],
        ),
        compiler_params=pltpu.CompilerParams(
            dimension_semantics=("parallel", "arbitrary"),
            vmem_limit_bytes=vmem_limit,
        ),
        cost_estimate=pl.CostEstimate(
            flops=5 * n_rows * n_cols,
            transcendentals=n_rows * n_cols,
            bytes_accessed=n_rows * n_cols * 4 + n_rows * tm * 4,
        ),
    )(sim_matrix, sim_matrix)

    partials = out[0::8, 0]                       # one partial sum per partition
    return jnp.sum(partials) / jnp.float32(n_rows)  # divide by static row count


def cross_en_ref(sim_matrix: jax.Array) -> jax.Array:
    logpt = jax.nn.log_softmax(sim_matrix, axis=-1)
    return jnp.mean(-jnp.diag(logpt))


if __name__ == "__main__":
    key = jax.random.PRNGKey(0)
    N = 512  # square similarity matrix (batch-of-pairs contrastive sim)
    sim = jax.random.normal(key, (N, N), dtype=jnp.float32) * 3.0

    ref = jax.block_until_ready(cross_en_ref(sim))

    # Default plan: large tile, 2 partial sums (megacore-friendly), grid (2, 1).
    loss = jax.block_until_ready(cross_en(sim))
    assert jnp.allclose(loss, ref, rtol=1e-5, atol=1e-5), (loss, ref)

    # Small artificial VMEM budget forces tm=128, grid (2, 2): exercises the
    # multi-step accumulate/init/finalize path as well.
    loss_tiled = jax.block_until_ready(
        cross_en(sim, vmem_budget_bytes=2 * 128 * N * 4)
    )
    assert jnp.allclose(loss_tiled, ref, rtol=1e-5, atol=1e-5), (loss_tiled, ref)

    print("KERNEL_OK")
</pallas_src>

<mosaic_0001>
module attributes {stable_mosaic.version = 11 : i64} {
  func.func @crossen_kernel(%arg0: i32, %arg1: i32, %arg2: memref<256x512xf32, #tpu.memory_space<vmem>>, %arg3: memref<256x256xf32, #tpu.memory_space<vmem>>, %arg4: memref<8x128xf32, #tpu.memory_space<vmem>>, %arg5: memref<256x1xf32, #tpu.memory_space<vmem>>) attributes {dimension_semantics = [#tpu.dimension_semantics<parallel>, #tpu.dimension_semantics<arbitrary>], iteration_bounds = array<i64: 2, 1>, scalar_prefetch = 0 : i64, scratch_operands = 1 : i64, tpu.core_type = #tpu.core_type<tc>, window_params = [{transform_indices = @transform_0, window_bounds = array<i64: 256, 512>}, {transform_indices = @transform_1, window_bounds = array<i64: 256, 256>}, {transform_indices = @transform_2, window_bounds = array<i64: 8, 128>}]} {
    %c0_i32 = arith.constant 0 : i32
    %0 = arith.cmpi eq, %arg1, %c0_i32 : i32
    %1 = arith.extui %0 : i1 to i32
    %c0_i32_0 = arith.constant 0 : i32
    %2 = arith.cmpi ne, %1, %c0_i32_0 : i32
    scf.if %2 {
      %cst_13 = arith.constant 0.000000e+00 : f32
      %28 = vector.broadcast %cst_13 : f32 to vector<256x1xf32>
      %c0_14 = arith.constant 0 : index
      %c0_15 = arith.constant 0 : index
      %29 = vector.load %arg5[%c0_14, %c0_15] : memref<256x1xf32, #tpu.memory_space<vmem>>, vector<256x1xf32>
      tpu.vector_store %arg5[%c0_14, %c0_15], %28 {strides = array<i32>} : memref<256x1xf32, #tpu.memory_space<vmem>>, vector<256x1xf32>,
    } else {
    }
    %c0 = arith.constant 0 : index
    %c0_1 = arith.constant 0 : index
    %3 = vector.load %arg2[%c0, %c0_1] : memref<256x512xf32, #tpu.memory_space<vmem>>, vector<256x512xf32>
    %cst = arith.constant dense<0xFF800000> : vector<256xf32>
    %4 = vector.multi_reduction <maximumf>, %3, %cst [1] : vector<256x512xf32> to vector<256xf32>
    %5 = vector.shape_cast %4 : vector<256xf32> to vector<256x1xf32>
    %6 = vector.broadcast %5 : vector<256x1xf32> to vector<256x512xf32>
    %7 = arith.subf %3, %6 : vector<256x512xf32>
    %8 = math.exp %7 : vector<256x512xf32>
    %cst_2 = arith.constant dense<0.000000e+00> : vector<256xf32>
    %9 = vector.multi_reduction <add>, %8, %cst_2 [1] : vector<256x512xf32> to vector<256xf32>
    %10 = vector.shape_cast %9 : vector<256xf32> to vector<256x1xf32>
    %11 = math.log %10 : vector<256x1xf32>
    %12 = arith.addf %11, %5 : vector<256x1xf32>
    %c0_3 = arith.constant 0 : index
    %c0_4 = arith.constant 0 : index
    %13 = vector.load %arg3[%c0_3, %c0_4] : memref<256x256xf32, #tpu.memory_space<vmem>>, vector<256x256xf32>
    %14 = tpu.iota {dimensions = array<i32: 0>} : vector<256x256xi32>
    %15 = tpu.iota {dimensions = array<i32: 1>} : vector<256x256xi32>
    %16 = arith.cmpi eq, %14, %15 : vector<256x256xi32>
    %cst_5 = arith.constant 0.000000e+00 : f32
    %17 = vector.broadcast %cst_5 : f32 to vector<256x256xf32>
    %18 = arith.select %16, %13, %17 : vector<256x256xi1>, vector<256x256xf32>
    %cst_6 = arith.constant dense<0.000000e+00> : vector<256xf32>
    %19 = vector.multi_reduction <add>, %18, %cst_6 [1] : vector<256x256xf32> to vector<256xf32>
    %20 = vector.shape_cast %19 : vector<256xf32> to vector<256x1xf32>
    %c0_7 = arith.constant 0 : index
    %c0_8 = arith.constant 0 : index
    %21 = vector.load %arg5[%c0_7, %c0_8] : memref<256x1xf32, #tpu.memory_space<vmem>>, vector<256x1xf32>
    %22 = arith.subf %12, %20 : vector<256x1xf32>
    %23 = arith.addf %21, %22 : vector<256x1xf32>
    %c0_9 = arith.constant 0 : index
    %c0_10 = arith.constant 0 : index
    %24 = vector.load %arg5[%c0_9, %c0_10] : memref<256x1xf32, #tpu.memory_space<vmem>>, vector<256x1xf32>
    tpu.vector_store %arg5[%c0_9, %c0_10], %23 {strides = array<i32>} : memref<256x1xf32, #tpu.memory_space<vmem>>, vector<256x1xf32>,
    %c0_i32_11 = arith.constant 0 : i32
    %25 = arith.cmpi eq, %arg1, %c0_i32_11 : i32
    %26 = arith.extui %25 : i1 to i32
    %c0_i32_12 = arith.constant 0 : i32
    %27 = arith.cmpi ne, %26, %c0_i32_12 : i32
    scf.if %27 {
      %cst_13 = arith.constant 0.000000e+00 : f32
      %28 = vector.broadcast %cst_13 : f32 to vector<8x128xf32>
      %c0_14 = arith.constant 0 : index
      %c0_15 = arith.constant 0 : index
      %29 = vector.load %arg5[%c0_14, %c0_15] : memref<256x1xf32, #tpu.memory_space<vmem>>, vector<256x1xf32>
      %30 = vector.shape_cast %29 : vector<256x1xf32> to vector<1x256x1xf32>
      %cst_16 = arith.constant dense<0.000000e+00> : vector<1xf32>
      %31 = vector.multi_reduction <add>, %30, %cst_16 [1, 2] : vector<1x256x1xf32> to vector<1xf32>
      %32 = vector.shape_cast %31 : vector<1xf32> to vector<1x1x1xf32>
      %33 = vector.extract %32[0, 0, 0] : f32 from vector<1x1x1xf32>
      %34 = vector.broadcast %33 : f32 to vector<8x128xf32>
      %35 = arith.addf %28, %34 : vector<8x128xf32>
      %c0_17 = arith.constant 0 : index
      %c0_18 = arith.constant 0 : index
      %36 = vector.load %arg4[%c0_17, %c0_18] : memref<8x128xf32, #tpu.memory_space<vmem>>, vector<8x128xf32>
      tpu.vector_store %arg4[%c0_17, %c0_18], %35 {strides = array<i32>} : memref<8x128xf32, #tpu.memory_space<vmem>>, vector<8x128xf32>,
    } else {
    }
    return
  }
  func.func @transform_0(%arg0: i32, %arg1: i32) -> (i32, i32) {
    %c1_i32 = arith.constant 1 : i32
    %0 = arith.muli %arg0, %c1_i32 : i32
    %1 = arith.addi %0, %arg1 : i32
    %c0_i32 = arith.constant 0 : i32
    %c0_i32_0 = arith.constant 0 : i32
    return %1, %c0_i32 : i32, i32
  }
  func.func @transform_1(%arg0: i32, %arg1: i32) -> (i32, i32) {
    %c1_i32 = arith.constant 1 : i32
    %0 = arith.muli %arg0, %c1_i32 : i32
    %1 = arith.addi %0, %arg1 : i32
    %c1_i32_0 = arith.constant 1 : i32
    %2 = arith.muli %arg0, %c1_i32_0 : i32
    %3 = arith.addi %2, %arg1 : i32
    %c0_i32 = arith.constant 0 : i32
    return %1, %3 : i32, i32
  }
  func.func @transform_2(%arg0: i32, %arg1: i32) -> (i32, i32) {
    %c0_i32 = arith.constant 0 : i32
    %c0_i32_0 = arith.constant 0 : i32
    return %arg0, %c0_i32 : i32, i32
  }
}

</mosaic_0001>

<llo_original>
// kernel: tpu_custom_call.1
$region0: #{tpu_custom_call.1}
  #allocation0 [shape = 'u32[]', space=smem, size = 0x4, offset = 0x4, fixed_abs, tag = 'smem constant byte address 0x4 - core index']
  #allocation1 [shape = 'u32[72,128]{1,0:T(1,128)}', space=vmem, size = 0x9000, scoped, tag = 'internal scratch']
  #allocation2 [shape = 'f32[256,1]{1,0:T(8,128)}', space=vmem, size = 0x20000, scoped, tag = 'scratch operand']
  %s0 = inlined_call_operand.hbm [shape: f32[512,512], index: 0, kind: input, shape index: {}]
  %s1 = inlined_call_operand.hbm [shape: f32[512,512], index: 1, kind: input, shape index: {}]
  %s2 = inlined_call_operand.hbm [shape: f32[16,128], index: 2, kind: output, shape index: {}]
  %s3 = sld [smem:[#allocation0]]
  $region57: #{tpu_custom_call.1} parent=0
    _
  %s5 = ssub.s32 1, %s3
  %s6 = scalar_select 0, %s5, %s3
  $region1: #{tpu_custom_call.1} parent=0
    #allocation3 [shape = 'u8[1048576]{0}', space=vmem, size = 0x100000, scoped, tag = 'input window, operand 0']
    #allocation4 [shape = 's32[2]{0}', space=sflag, size = 0x8, scoped, tag = 'scoped memory for tpu_custom_call.1']
    #allocation5 [shape = 's32[2]{0}', space=sflag, size = 0x8, scoped, tag = 'scoped memory for tpu_custom_call.1']
    #allocation6 [shape = 'u8[524288]{0}', space=vmem, size = 0x80000, scoped, tag = 'input window, operand 1']
    #allocation7 [shape = 's32[2]{0}', space=sflag, size = 0x8, scoped, tag = 'scoped memory for tpu_custom_call.1']
    #allocation8 [shape = 'u8[8192]{0}', space=vmem, size = 0x2000, scoped, tag = 'output window, operand 0']
    %7 = vsyncpa [#allocation4], 0
    %s8 = scalar_lea.sflag [#allocation4], 1
    %9 = vsyncpa %s8, 0
    %10 = vsyncpa [#allocation7], 0
    %s11 = scalar_lea.sflag [#allocation7], 1
    %12 = vsyncpa %s11, 0
    %13 = vsyncpa [#allocation5], 0
    %s14 = scalar_lea.sflag [#allocation5], 1
    %15 = vsyncpa %s14, 0
    loop: start=0, step=1, limit=4
    $region2: #{tpu_custom_call.1} parent=1 // loop_pre_header
      _
    $region3: #{tpu_custom_call.1} parent=1 // loop_header
      %s17 = sphi 0, %s21
      %p18 = scmp.ge.s32.totalorder %s17, 4
      %s24 = sphi 0, %s36
      %s25 = sphi 0, %s32
      %s26 = sphi 0, %s24
      %s27 = sphi 0, %s25
      %s28 = sphi 0, %s26
      %s29 = sphi 0, %s27
      %s41 = sphi 0, %s43
      %s44 = sphi 0, %s41
      %s45 = sphi 0, %s44
      %s61 = sphi 0, %s45
      %s71 = sphi 0, %s73
      %s74 = sphi 0, %s71
      %s75 = sphi 0, %s74
      %s91 = sphi 0, %s75
      %s97 = sphi 0, %s99
      %s100 = sphi 0, %s97
      %s101 = sphi 0, %s100
      %s117 = sphi 0, %s101
    $region4: #{tpu_custom_call.1} parent=1 // loop_header_branch
      %20 = sbr.rel (%p18) target = $region8
    $region5: #{tpu_custom_call.1} parent=1 // loop_body
      %s22 = ssub.s32 %s17, 1
      %s23 = ssub.s32 %s17, 2
      %s30 = sadd.s32 1, %s25
      %p31 = scmp.ge.s32.totalorder %s30, 1
      %s32 = scalar_select %p31, 0, %s30
      %s33 = sadd.s32 1, %s24
      %s34 = scalar_select %p31, %s33, %s24
      %p35 = scmp.ge.s32.totalorder %s34, 2
      %s36 = scalar_select %p35, 0, %s34
      %s37 = sadd.s32 %s24, %s25
      %s38 = sadd.s32 %s36, %s32
      %s39 = ssub.s32 %s37, %s38
      %p40 = scmp.eq.s32.totalorder %s39, 0
      %s42 = sadd.s32 %s41, 1
      %s43 = scalar_select %p40, %s41, %s42
      %p46 = pneg %p40
      %p47 = scmp.eq.s32.totalorder %s17, 1
      %p48 = por %p46, %p47
      %p49 = scmp.ne.s32.totalorder %s41, %s44
      %p50 = scmp.eq.s32.totalorder %s17, 0
      %p51 = por %p49, %p50
      %p52 = scmp.ne.s32.totalorder %s41, %s44
      %p53 = scmp.eq.s32.totalorder %s22, 1
      %p54 = por %p52, %p53
      %p55 = scmp.ne.s32.totalorder %s44, %s45
      %p56 = scmp.eq.s32.totalorder %s22, 0
      %p57 = por %p55, %p56
      %p58 = scmp.ne.s32.totalorder %s44, %s45
      %p59 = scmp.eq.s32.totalorder %s23, 1
      %p60 = por %p58, %p59
      %p62 = scmp.ne.s32.totalorder %s45, %s61
      %p63 = scmp.eq.s32.totalorder %s23, 0
      %p64 = por %p62, %p63
      %s65 = sadd.s32 %s24, %s25
      %s66 = sadd.s32 %s36, %s32
      %s67 = ssub.s32 %s65, %s66
      %s68 = ssub.s32 %s65, %s66
      %s69 = sor.u32 %s67, %s68
      %p70 = scmp.eq.s32.totalorder %s69, 0
      %s72 = sadd.s32 %s71, 1
      %s73 = scalar_select %p70, %s71, %s72
      %p76 = pneg %p70
      %p77 = scmp.eq.s32.totalorder %s17, 1
      %p78 = por %p76, %p77
      %p79 = scmp.ne.s32.totalorder %s71, %s74
      %p80 = scmp.eq.s32.totalorder %s17, 0
      %p81 = por %p79, %p80
      %p82 = scmp.ne.s32.totalorder %s71, %s74
      %p83 = scmp.eq.s32.totalorder %s22, 1
      %p84 = por %p82, %p83
      %p85 = scmp.ne.s32.totalorder %s74, %s75
      %p86 = scmp.eq.s32.totalorder %s22, 0
      %p87 = por %p85, %p86
      %p88 = scmp.ne.s32.totalorder %s74, %s75
      %p89 = scmp.eq.s32.totalorder %s23, 1
      %p90 = por %p88, %p89
      %p92 = scmp.ne.s32.totalorder %s75, %s91
      %p93 = scmp.eq.s32.totalorder %s23, 0
      %p94 = por %p92, %p93
      %s95 = ssub.s32 %s24, %s36
      %p96 = scmp.eq.s32.totalorder %s95, 0
      %s98 = sadd.s32 %s97, 1
      %s99 = scalar_select %p96, %s97, %s98
      %p102 = pneg %p96
      %p103 = scmp.eq.s32.totalorder %s17, 1
      %p104 = por %p102, %p103
      %p105 = scmp.ne.s32.totalorder %s97, %s100
      %p106 = scmp.eq.s32.totalorder %s17, 0
      %p107 = por %p105, %p106
      %p108 = scmp.ne.s32.totalorder %s97, %s100
      %p109 = scmp.eq.s32.totalorder %s22, 1
      %p110 = por %p108, %p109
      %p111 = scmp.ne.s32.totalorder %s100, %s101
      %p112 = scmp.eq.s32.totalorder %s22, 0
      %p113 = por %p111, %p112
      %p114 = scmp.ne.s32.totalorder %s100, %s101
      %p115 = scmp.eq.s32.totalorder %s23, 1
      %p116 = por %p114, %p115
      %p118 = scmp.ne.s32.totalorder %s101, %s117
      %p119 = scmp.eq.s32.totalorder %s23, 0
      %p120 = por %p118, %p119
      %p121 = scmp.le.s32.totalorder 1, %s17
      %p122 = scmp.lt.s32.totalorder %s17, 3
      %p123 = pnand %p121, %p122
      %p124 = pneg %p123
      // Predicated region
      $region9: #{tpu_custom_call.1} parent=5 // pred_check
        _
      $region10: #{tpu_custom_call.1} parent=5 // pred_check_branch
        %126 = sbr.rel (%p123) target = $region12
      $region11: #{tpu_custom_call.1} parent=5 // pred_region
        %s127 = ssub.s32 %s17, 1
      $region12: #{tpu_custom_call.1} parent=5 // pred_fallthru
        _
      %p128 = scmp.lt.s32.totalorder %s17, 2
      // Predicated region
      $region13: #{tpu_custom_call.1} parent=5 // pred_check
        %p129 = pneg %p128
      $region14: #{tpu_custom_call.1} parent=5 // pred_check_branch
        %131 = sbr.rel (%p129) target = $region16
      $region15: #{tpu_custom_call.1} parent=5 // pred_region
        // Predicated region
        $region17: #{tpu_custom_call.1} parent=15 // pred_check
          %p132 = pneg %p51
        $region18: #{tpu_custom_call.1} parent=15 // pred_check_branch
          %134 = sbr.rel (%p132) target = $region20
        $region19: #{tpu_custom_call.1} parent=15 // pred_region
          %s135 = sand.u32 %s41, 1
          %s136 = scalar_lea.sflag [#allocation4], %s135
          %s137 = sand.u32 %s41, 1
          %s138 = smul.addr %s137, 1024
          %s139 = scalar_lea.vmem [#allocation3], %s138
          %s140 = sadd.s32 %s24, %s25
          %s141 = smul.u32 32, %s140
          %143 = vsyncadd %s136, 0
          %s144 = smul.addr %s141, 4
          %s145 = smul.addr %s144, 8
          %s146 = scalar_lea.hbm %s0, %s145
          %s147 = sshll.u32 %s146, 4
          %s148 = int_to_ptr.hbm [resolvable:$true] %s147
          %s149 = sshll.u32 %s139, 4
          %s150 = int_to_ptr.vmem [resolvable:$true] %s149
          %155 = dma.hbm_to_vmem [thread:$0]  %s148, 16384, %s150, %s136, 512, 512, 32
        $region20: #{tpu_custom_call.1} parent=15 // pred_fallthru
          _
        // Predicated region
        $region21: #{tpu_custom_call.1} parent=15 // pred_check
          %p156 = pneg %p81
        $region22: #{tpu_custom_call.1} parent=15 // pred_check_branch
          %158 = sbr.rel (%p156) target = $region24
        $region23: #{tpu_custom_call.1} parent=15 // pred_region
          %s159 = sand.u32 %s71, 1
          %s160 = scalar_lea.sflag [#allocation7], %s159
          %s161 = sand.u32 %s71, 1
          %s162 = smul.addr %s161, 512
          %s163 = scalar_lea.vmem [#allocation6], %s162
          %s164 = sadd.s32 %s24, %s25
          %s165 = smul.u32 32, %s164
          %s166 = smul.u32 2, %s164
          %168 = vsyncadd %s160, 0
          %s169 = smul.addr %s165, 4
          %s170 = sadd.s32 %s166, %s169
          %s171 = smul.addr %s170, 8
          %s172 = scalar_lea.hbm %s1, %s171
          %s173 = sshll.u32 %s172, 4
          %s174 = int_to_ptr.hbm [resolvable:$true] %s173
          %s175 = sshll.u32 %s163, 4
          %s176 = int_to_ptr.vmem [resolvable:$true] %s175
          %181 = dma.hbm_to_vmem [thread:$0]  %s174, 8192, %s176, %s160, 512, 256, 16
        $region24: #{tpu_custom_call.1} parent=15 // pred_fallthru
          _
      $region16: #{tpu_custom_call.1} parent=5 // pred_fallthru
        _
      %p182 = scmp.le.s32.totalorder 1, %s17
      %p183 = scmp.lt.s32.totalorder %s17, 3
      %p184 = pnand %p182, %p183
      %p185 = pneg %p184
      // Predicated region
      $region25: #{tpu_custom_call.1} parent=5 // pred_check
        _
      $region26: #{tpu_custom_call.1} parent=5 // pred_check_branch
        %187 = sbr.rel (%p184) target = $region28
      $region27: #{tpu_custom_call.1} parent=5 // pred_region
        %s188 = ssub.s32 %s17, 1
        %s189 = sand.u32 %s44, 1
        %s190 = scalar_lea.sflag [#allocation4], %s189
        %s191 = sand.u32 %s44, 1
        %s192 = smul.addr %s191, 1024
        %s193 = scalar_lea.vmem [#allocation3], %s192
        // Predicated region
        $region29: #{tpu_custom_call.1} parent=27 // pred_check
          %p194 = pneg %p57
        $region30: #{tpu_custom_call.1} parent=27 // pred_check_branch
          %196 = sbr.rel (%p194) target = $region32
        $region31: #{tpu_custom_call.1} parent=27 // pred_region
          %198 = dma.done %s190, 16384
        $region32: #{tpu_custom_call.1} parent=27 // pred_fallthru
          _
        %s199 = sand.u32 %s74, 1
        %s200 = scalar_lea.sflag [#allocation7], %s199
        %s201 = sand.u32 %s74, 1
        %s202 = smul.addr %s201, 512
        %s203 = scalar_lea.vmem [#allocation6], %s202
        // Predicated region
        $region33: #{tpu_custom_call.1} parent=27 // pred_check
          %p204 = pneg %p87
        $region34: #{tpu_custom_call.1} parent=27 // pred_check_branch
          %206 = sbr.rel (%p204) target = $region36
        $region35: #{tpu_custom_call.1} parent=27 // pred_region
          %208 = dma.done %s200, 8192
        $region36: #{tpu_custom_call.1} parent=27 // pred_fallthru
          _
        %s209 = sand.u32 %s44, 1
        %s210 = scalar_lea.sflag [#allocation4], %s209
        %s211 = sand.u32 %s44, 1
        %s212 = smul.addr %s211, 1024
        %s213 = scalar_lea.vmem [#allocation3], %s212
        %p214 = pneg %p57
        %p215 = pneg %p54
        %s216 = sand.u32 %s74, 1
        %s217 = scalar_lea.sflag [#allocation7], %s216
        %s218 = sand.u32 %s74, 1
        %s219 = smul.addr %s218, 512
        %s220 = scalar_lea.vmem [#allocation6], %s219
        %p221 = pneg %p87
        %p222 = pneg %p84
        %p223 = pneg %p113
        %p224 = pneg %p110
        %s225 = sand.u32 %s100, 1
        %s226 = scalar_lea.sflag [#allocation5], %s225
        %s227 = sand.u32 %s100, 1
        %s228 = smul.addr %s227, 8
        %s229 = scalar_lea.vmem [#allocation8], %s228
        %s230 = sadd.s32 %s26, %s27
        %s231 = smul.u32 32, %s230
        %s232 = sadd.s32 %s26, %s27
        %s233 = smul.u32 32, %s232
        %s234 = smul.u32 2, %s232
        %p235 = scmp.eq.s32.totalorder %s27, 0
        // Predicated region
        $region37: #{tpu_custom_call.1} parent=27 // pred_check
          %p236 = pneg %p235
        $region38: #{tpu_custom_call.1} parent=27 // pred_check_branch
          %238 = sbr.rel (%p236) target = $region40
        $region39: #{tpu_custom_call.1} parent=27 // pred_region
          %vm239 = vcmask 7168
          %240 = vst.msk [vmem:[#allocation2] sm:$0xff] %vm239, 0.0
          %241 = vst.msk [vmem:[#allocation2 + $0x8] sm:$0xff] %vm239, 0.0
          %242 = vst.msk [vmem:[#allocation2 + $0x10] sm:$0xff] %vm239, 0.0
          %243 = vst.msk [vmem:[#allocation2 + $0x18] sm:$0xff] %vm239, 0.0
          %244 = vst.msk [vmem:[#allocation2 + $0x20] sm:$0xff] %vm239, 0.0
          %245 = vst.msk [vmem:[#allocation2 + $0x28] sm:$0xff] %vm239, 0.0
          %246 = vst.msk [vmem:[#allocation2 + $0x30] sm:$0xff] %vm239, 0.0
          %247 = vst.msk [vmem:[#allocation2 + $0x38] sm:$0xff] %vm239, 0.0
          %248 = vst.msk [vmem:[#allocation2 + $0x40] sm:$0xff] %vm239, 0.0
          %249 = vst.msk [vmem:[#allocation2 + $0x48] sm:$0xff] %vm239, 0.0
          %250 = vst.msk [vmem:[#allocation2 + $0x50] sm:$0xff] %vm239, 0.0
          %251 = vst.msk [vmem:[#allocation2 + $0x58] sm:$0xff] %vm239, 0.0
          %252 = vst.msk [vmem:[#allocation2 + $0x60] sm:$0xff] %vm239, 0.0
          %253 = vst.msk [vmem:[#allocation2 + $0x68] sm:$0xff] %vm239, 0.0
          %254 = vst.msk [vmem:[#allocation2 + $0x70] sm:$0xff] %vm239, 0.0
          %255 = vst.msk [vmem:[#allocation2 + $0x78] sm:$0xff] %vm239, 0.0
          %256 = vst.msk [vmem:[#allocation2 + $0x80] sm:$0xff] %vm239, 0.0
          %257 = vst.msk [vmem:[#allocation2 + $0x88] sm:$0xff] %vm239, 0.0
          %258 = vst.msk [vmem:[#allocation2 + $0x90] sm:$0xff] %vm239, 0.0
          %259 = vst.msk [vmem:[#allocation2 + $0x98] sm:$0xff] %vm239, 0.0
          %260 = vst.msk [vmem:[#allocation2 + $0xa0] sm:$0xff] %vm239, 0.0
          %261 = vst.msk [vmem:[#allocation2 + $0xa8] sm:$0xff] %vm239, 0.0
          %262 = vst.msk [vmem:[#allocation2 + $0xb0] sm:$0xff] %vm239, 0.0
          %263 = vst.msk [vmem:[#allocation2 + $0xb8] sm:$0xff] %vm239, 0.0
          %264 = vst.msk [vmem:[#allocation2 + $0xc0] sm:$0xff] %vm239, 0.0
          %265 = vst.msk [vmem:[#allocation2 + $0xc8] sm:$0xff] %vm239, 0.0
          %266 = vst.msk [vmem:[#allocation2 + $0xd0] sm:$0xff] %vm239, 0.0
          %267 = vst.msk [vmem:[#allocation2 + $0xd8] sm:$0xff] %vm239, 0.0
          %268 = vst.msk [vmem:[#allocation2 + $0xe0] sm:$0xff] %vm239, 0.0
          %269 = vst.msk [vmem:[#allocation2 + $0xe8] sm:$0xff] %vm239, 0.0
          %270 = vst.msk [vmem:[#allocation2 + $0xf0] sm:$0xff] %vm239, 0.0
          %271 = vst.msk [vmem:[#allocation2 + $0xf8] sm:$0xff] %vm239, 0.0
        $region40: #{tpu_custom_call.1} parent=27 // pred_fallthru
          _
        %v272 = vld [vmem:[%s193] sm:$0xff]
        %v273 = vld [vmem:[%s193 + $0x8] sm:$0xff]
        %v274 = vld [vmem:[%s193 + $0x10] sm:$0xff]
        %v275 = vld [vmem:[%s193 + $0x18] sm:$0xff]
        %v276 = vld [vmem:[%s193 + $0x20] sm:$0xff]
        %v277 = vld [vmem:[%s193 + $0x28] sm:$0xff]
        %v278 = vld [vmem:[%s193 + $0x30] sm:$0xff]
        %v279 = vld [vmem:[%s193 + $0x38] sm:$0xff]
        %v280 = vld [vmem:[%s193 + $0x40] sm:$0xff]
        %v281 = vld [vmem:[%s193 + $0x48] sm:$0xff]
        %v282 = vld [vmem:[%s193 + $0x50] sm:$0xff]
        %v283 = vld [vmem:[%s193 + $0x58] sm:$0xff]
        %v284 = vld [vmem:[%s193 + $0x60] sm:$0xff]
        %v285 = vld [vmem:[%s193 + $0x68] sm:$0xff]
        %v286 = vld [vmem:[%s193 + $0x70] sm:$0xff]
        %v287 = vld [vmem:[%s193 + $0x78] sm:$0xff]
        %v288 = vld [vmem:[%s193 + $0x80] sm:$0xff]
        %v289 = vld [vmem:[%s193 + $0x88] sm:$0xff]
        %v290 = vld [vmem:[%s193 + $0x90] sm:$0xff]
        %v291 = vld [vmem:[%s193 + $0x98] sm:$0xff]
        %v292 = vld [vmem:[%s193 + $0xa0] sm:$0xff]
        %v293 = vld [vmem:[%s193 + $0xa8] sm:$0xff]
        %v294 = vld [vmem:[%s193 + $0xb0] sm:$0xff]
        %v295 = vld [vmem:[%s193 + $0xb8] sm:$0xff]
        %v296 = vld [vmem:[%s193 + $0xc0] sm:$0xff]
        %v297 = vld [vmem:[%s193 + $0xc8] sm:$0xff]
        %v298 = vld [vmem:[%s193 + $0xd0] sm:$0xff]
        %v299 = vld [vmem:[%s193 + $0xd8] sm:$0xff]
        %v300 = vld [vmem:[%s193 + $0xe0] sm:$0xff]
        %v301 = vld [vmem:[%s193 + $0xe8] sm:$0xff]
        %v302 = vld [vmem:[%s193 + $0xf0] sm:$0xff]
        %v303 = vld [vmem:[%s193 + $0xf8] sm:$0xff]
        %v304 = vld [vmem:[%s193 + $0x100] sm:$0xff]
        %v305 = vld [vmem:[%s193 + $0x108] sm:$0xff]
        %v306 = vld [vmem:[%s193 + $0x110] sm:$0xff]
        %v307 = vld [vmem:[%s193 + $0x118] sm:$0xff]
        %v308 = vld [vmem:[%s193 + $0x120] sm:$0xff]
        %v309 = vld [vmem:[%s193 + $0x128] sm:$0xff]
        %v310 = vld [vmem:[%s193 + $0x130] sm:$0xff]
        %v311 = vld [vmem:[%s193 + $0x138] sm:$0xff]
        %v312 = vld [vmem:[%s193 + $0x140] sm:$0xff]
        %v313 = vld [vmem:[%s193 + $0x148] sm:$0xff]
        %v314 = vld [vmem:[%s193 + $0x150] sm:$0xff]
        %v315 = vld [vmem:[%s193 + $0x158] sm:$0xff]
        %v316 = vld [vmem:[%s193 + $0x160] sm:$0xff]
        %v317 = vld [vmem:[%s193 + $0x168] sm:$0xff]
        %v318 = vld [vmem:[%s193 + $0x170] sm:$0xff]
        %v319 = vld [vmem:[%s193 + $0x178] sm:$0xff]
        %v320 = vld [vmem:[%s193 + $0x180] sm:$0xff]
        %v321 = vld [vmem:[%s193 + $0x188] sm:$0xff]
        %v322 = vld [vmem:[%s193 + $0x190] sm:$0xff]
        %v323 = vld [vmem:[%s193 + $0x198] sm:$0xff]
        %v324 = vld [vmem:[%s193 + $0x1a0] sm:$0xff]
        %v325 = vld [vmem:[%s193 + $0x1a8] sm:$0xff]
        %v326 = vld [vmem:[%s193 + $0x1b0] sm:$0xff]
        %v327 = vld [vmem:[%s193 + $0x1b8] sm:$0xff]
        %v328 = vld [vmem:[%s193 + $0x1c0] sm:$0xff]
        %v329 = vld [vmem:[%s193 + $0x1c8] sm:$0xff]
        %v330 = vld [vmem:[%s193 + $0x1d0] sm:$0xff]
        %v331 = vld [vmem:[%s193 + $0x1d8] sm:$0xff]
        %v332 = vld [vmem:[%s193 + $0x1e0] sm:$0xff]
        %v333 = vld [vmem:[%s193 + $0x1e8] sm:$0xff]
        %v334 = vld [vmem:[%s193 + $0x1f0] sm:$0xff]
        %v335 = vld [vmem:[%s193 + $0x1f8] sm:$0xff]
        %v336 = vld [vmem:[%s193 + $0x200] sm:$0xff]
        %v337 = vld [vmem:[%s193 + $0x208] sm:$0xff]
        %v338 = vld [vmem:[%s193 + $0x210] sm:$0xff]
        %v339 = vld [vmem:[%s193 + $0x218] sm:$0xff]
        %v340 = vld [vmem:[%s193 + $0x220] sm:$0xff]
        %v341 = vld [vmem:[%s193 + $0x228] sm:$0xff]
        %v342 = vld [vmem:[%s193 + $0x230] sm:$0xff]
        %v343 = vld [vmem:[%s193 + $0x238] sm:$0xff]
        %v344 = vld [vmem:[%s193 + $0x240] sm:$0xff]
        %v345 = vld [vmem:[%s193 + $0x248] sm:$0xff]
        %v346 = vld [vmem:[%s193 + $0x250] sm:$0xff]
        %v347 = vld [vmem:[%s193 + $0x258] sm:$0xff]
        %v348 = vld [vmem:[%s193 + $0x260] sm:$0xff]
        %v349 = vld [vmem:[%s193 + $0x268] sm:$0xff]
        %v350 = vld [vmem:[%s193 + $0x270] sm:$0xff]
        %v351 = vld [vmem:[%s193 + $0x278] sm:$0xff]
        %v352 = vld [vmem:[%s193 + $0x280] sm:$0xff]
        %v353 = vld [vmem:[%s193 + $0x288] sm:$0xff]
        %v354 = vld [vmem:[%s193 + $0x290] sm:$0xff]
        %v355 = vld [vmem:[%s193 + $0x298] sm:$0xff]
        %v356 = vld [vmem:[%s193 + $0x2a0] sm:$0xff]
        %v357 = vld [vmem:[%s193 + $0x2a8] sm:$0xff]
        %v358 = vld [vmem:[%s193 + $0x2b0] sm:$0xff]
        %v359 = vld [vmem:[%s193 + $0x2b8] sm:$0xff]
        %v360 = vld [vmem:[%s193 + $0x2c0] sm:$0xff]
        %v361 = vld [vmem:[%s193 + $0x2c8] sm:$0xff]
        %v362 = vld [vmem:[%s193 + $0x2d0] sm:$0xff]
        %v363 = vld [vmem:[%s193 + $0x2d8] sm:$0xff]
        %v364 = vld [vmem:[%s193 + $0x2e0] sm:$0xff]
        %v365 = vld [vmem:[%s193 + $0x2e8] sm:$0xff]
        %v366 = vld [vmem:[%s193 + $0x2f0] sm:$0xff]
        %v367 = vld [vmem:[%s193 + $0x2f8] sm:$0xff]
        %v368 = vld [vmem:[%s193 + $0x300] sm:$0xff]
        %v369 = vld [vmem:[%s193 + $0x308] sm:$0xff]
        %v370 = vld [vmem:[%s193 + $0x310] sm:$0xff]
        %v371 = vld [vmem:[%s193 + $0x318] sm:$0xff]
        %v372 = vld [vmem:[%s193 + $0x320] sm:$0xff]
        %v373 = vld [vmem:[%s193 + $0x328] sm:$0xff]
        %v374 = vld [vmem:[%s193 + $0x330] sm:$0xff]
        %v375 = vld [vmem:[%s193 + $0x338] sm:$0xff]
        %v376 = vld [vmem:[%s193 + $0x340] sm:$0xff]
        %v377 = vld [vmem:[%s193 + $0x348] sm:$0xff]
        %v378 = vld [vmem:[%s193 + $0x350] sm:$0xff]
        %v379 = vld [vmem:[%s193 + $0x358] sm:$0xff]
        %v380 = vld [vmem:[%s193 + $0x360] sm:$0xff]
        %v381 = vld [vmem:[%s193 + $0x368] sm:$0xff]
        %v382 = vld [vmem:[%s193 + $0x370] sm:$0xff]
        %v383 = vld [vmem:[%s193 + $0x378] sm:$0xff]
        %v384 = vld [vmem:[%s193 + $0x380] sm:$0xff]
        %v385 = vld [vmem:[%s193 + $0x388] sm:$0xff]
        %v386 = vld [vmem:[%s193 + $0x390] sm:$0xff]
        %v387 = vld [vmem:[%s193 + $0x398] sm:$0xff]
        %v388 = vld [vmem:[%s193 + $0x3a0] sm:$0xff]
        %v389 = vld [vmem:[%s193 + $0x3a8] sm:$0xff]
        %v390 = vld [vmem:[%s193 + $0x3b0] sm:$0xff]
        %v391 = vld [vmem:[%s193 + $0x3b8] sm:$0xff]
        %v392 = vld [vmem:[%s193 + $0x3c0] sm:$0xff]
        %v393 = vld [vmem:[%s193 + $0x3c8] sm:$0xff]
        %v394 = vld [vmem:[%s193 + $0x3d0] sm:$0xff]
        %v395 = vld [vmem:[%s193 + $0x3d8] sm:$0xff]
        %v396 = vld [vmem:[%s193 + $0x3e0] sm:$0xff]
        %v397 = vld [vmem:[%s193 + $0x3e8] sm:$0xff]
        %v398 = vld [vmem:[%s193 + $0x3f0] sm:$0xff]
        %v399 = vld [vmem:[%s193 + $0x3f8] sm:$0xff]
        %v400 = vmax.f32 %v272, %v273
        %v401 = vmax.f32 %v400, %v274
        %v402 = vmax.f32 %v401, %v275
        %403 = vmax.xlane.f32.xlu0 %v402
        %v404 = vpop.xlane.xlu0 %403
        %v405 = vmax.f32 %v276, %v277
        %v406 = vmax.f32 %v405, %v278
        %v407 = vmax.f32 %v406, %v279
        %408 = vmax.xlane.f32.xlu0 %v407
        %v409 = vpop.xlane.xlu0 %408
        %v410 = vmax.f32 %v280, %v281
        %v411 = vmax.f32 %v410, %v282
        %v412 = vmax.f32 %v411, %v283
        %413 = vmax.xlane.f32.xlu0 %v412
        %v414 = vpop.xlane.xlu0 %413
        %v415 = vmax.f32 %v284, %v285
        %v416 = vmax.f32 %v415, %v286
        %v417 = vmax.f32 %v416, %v287
        %418 = vmax.xlane.f32.xlu0 %v417
        %v419 = vpop.xlane.xlu0 %418
        %v420 = vmax.f32 %v288, %v289
        %v421 = vmax.f32 %v420, %v290
        %v422 = vmax.f32 %v421, %v291
        %423 = vmax.xlane.f32.xlu0 %v422
        %v424 = vpop.xlane.xlu0 %423
        %v425 = vmax.f32 %v292, %v293
        %v426 = vmax.f32 %v425, %v294
        %v427 = vmax.f32 %v426, %v295
        %428 = vmax.xlane.f32.xlu0 %v427
        %v429 = vpop.xlane.xlu0 %428
        %v430 = vmax.f32 %v296, %v297
        %v431 = vmax.f32 %v430, %v298
        %v432 = vmax.f32 %v431, %v299
        %433 = vmax.xlane.f32.xlu0 %v432
        %v434 = vpop.xlane.xlu0 %433
        %v435 = vmax.f32 %v300, %v301
        %v436 = vmax.f32 %v435, %v302
        %v437 = vmax.f32 %v436, %v303
        %438 = vmax.xlane.f32.xlu0 %v437
        %v439 = vpop.xlane.xlu0 %438
        %v440 = vmax.f32 %v304, %v305
        %v441 = vmax.f32 %v440, %v306
        %v442 = vmax.f32 %v441, %v307
        %443 = vmax.xlane.f32.xlu0 %v442
        %v444 = vpop.xlane.xlu0 %443
        %v445 = vmax.f32 %v308, %v309
        %v446 = vmax.f32 %v445, %v310
        %v447 = vmax.f32 %v446, %v311
        %448 = vmax.xlane.f32.xlu0 %v447
        %v449 = vpop.xlane.xlu0 %448
        %v450 = vmax.f32 %v312, %v313
        %v451 = vmax.f32 %v450, %v314
        %v452 = vmax.f32 %v451, %v315
        %453 = vmax.xlane.f32.xlu0 %v452
        %v454 = vpop.xlane.xlu0 %453
        %v455 = vmax.f32 %v316, %v317
        %v456 = vmax.f32 %v455, %v318
        %v457 = vmax.f32 %v456, %v319
        %458 = vmax.xlane.f32.xlu0 %v457
        %v459 = vpop.xlane.xlu0 %458
        %v460 = vmax.f32 %v320, %v321
        %v461 = vmax.f32 %v460, %v322
        %v462 = vmax.f32 %v461, %v323
        %463 = vmax.xlane.f32.xlu0 %v462
        %v464 = vpop.xlane.xlu0 %463
        %v465 = vmax.f32 %v324, %v325
        %v466 = vmax.f32 %v465, %v326
        %v467 = vmax.f32 %v466, %v327
        %468 = vmax.xlane.f32.xlu0 %v467
        %v469 = vpop.xlane.xlu0 %468
        %v470 = vmax.f32 %v328, %v329
        %v471 = vmax.f32 %v470, %v330
        %v472 = vmax.f32 %v471, %v331
        %473 = vmax.xlane.f32.xlu0 %v472
        %v474 = vpop.xlane.xlu0 %473
        %v475 = vmax.f32 %v332, %v333
        %v476 = vmax.f32 %v475, %v334
        %v477 = vmax.f32 %v476, %v335
        %478 = vmax.xlane.f32.xlu0 %v477
        %v479 = vpop.xlane.xlu0 %478
        %v480 = vmax.f32 %v336, %v337
        %v481 = vmax.f32 %v480, %v338
        %v482 = vmax.f32 %v481, %v339
        %483 = vmax.xlane.f32.xlu0 %v482
        %v484 = vpop.xlane.xlu0 %483
        %v485 = vmax.f32 %v340, %v341
        %v486 = vmax.f32 %v485, %v342
        %v487 = vmax.f32 %v486, %v343
        %488 = vmax.xlane.f32.xlu0 %v487
        %v489 = vpop.xlane.xlu0 %488
        %v490 = vmax.f32 %v344, %v345
        %v491 = vmax.f32 %v490, %v346
        %v492 = vmax.f32 %v491, %v347
        %493 = vmax.xlane.f32.xlu0 %v492
        %v494 = vpop.xlane.xlu0 %493
        %v495 = vmax.f32 %v348, %v349
        %v496 = vmax.f32 %v495, %v350
        %v497 = vmax.f32 %v496, %v351
        %498 = vmax.xlane.f32.xlu0 %v497
        %v499 = vpop.xlane.xlu0 %498
        %v500 = vmax.f32 %v352, %v353
        %v501 = vmax.f32 %v500, %v354
        %v502 = vmax.f32 %v501, %v355
        %503 = vmax.xlane.f32.xlu0 %v502
        %v504 = vpop.xlane.xlu0 %503
        %v505 = vmax.f32 %v356, %v357
        %v506 = vmax.f32 %v505, %v358
        %v507 = vmax.f32 %v506, %v359
        %508 = vmax.xlane.f32.xlu0 %v507
        %v509 = vpop.xlane.xlu0 %508
        %v510 = vmax.f32 %v360, %v361
        %v511 = vmax.f32 %v510, %v362
        %v512 = vmax.f32 %v511, %v363
        %513 = vmax.xlane.f32.xlu0 %v512
        %v514 = vpop.xlane.xlu0 %513
        %v515 = vmax.f32 %v364, %v365
        %v516 = vmax.f32 %v515, %v366
        %v517 = vmax.f32 %v516, %v367
        %518 = vmax.xlane.f32.xlu0 %v517
        %v519 = vpop.xlane.xlu0 %518
        %v520 = vmax.f32 %v368, %v369
        %v521 = vmax.f32 %v520, %v370
        %v522 = vmax.f32 %v521, %v371
        %523 = vmax.xlane.f32.xlu0 %v522
        %v524 = vpop.xlane.xlu0 %523
        %v525 = vmax.f32 %v372, %v373
        %v526 = vmax.f32 %v525, %v374
        %v527 = vmax.f32 %v526, %v375
        %528 = vmax.xlane.f32.xlu0 %v527
        %v529 = vpop.xlane.xlu0 %528
        %v530 = vmax.f32 %v376, %v377
        %v531 = vmax.f32 %v530, %v378
        %v532 = vmax.f32 %v531, %v379
        %533 = vmax.xlane.f32.xlu0 %v532
        %v534 = vpop.xlane.xlu0 %533
        %v535 = vmax.f32 %v380, %v381
        %v536 = vmax.f32 %v535, %v382
        %v537 = vmax.f32 %v536, %v383
        %538 = vmax.xlane.f32.xlu0 %v537
        %v539 = vpop.xlane.xlu0 %538
        %v540 = vmax.f32 %v384, %v385
        %v541 = vmax.f32 %v540, %v386
        %v542 = vmax.f32 %v541, %v387
        %543 = vmax.xlane.f32.xlu0 %v542
        %v544 = vpop.xlane.xlu0 %543
        %v545 = vmax.f32 %v388, %v389
        %v546 = vmax.f32 %v545, %v390
        %v547 = vmax.f32 %v546, %v391
        %548 = vmax.xlane.f32.xlu0 %v547
        %v549 = vpop.xlane.xlu0 %548
        %v550 = vmax.f32 %v392, %v393
        %v551 = vmax.f32 %v550, %v394
        %v552 = vmax.f32 %v551, %v395
        %553 = vmax.xlane.f32.xlu0 %v552
        %v554 = vpop.xlane.xlu0 %553
        %v555 = vmax.f32 %v396, %v397
        %v556 = vmax.f32 %v555, %v398
        %v557 = vmax.f32 %v556, %v399
        %558 = vmax.xlane.f32.xlu0 %v557
        %v559 = vpop.xlane.xlu0 %558
        %v560 = vsub.f32 %v272, %v404
        %v561 = vsub.f32 %v273, %v404
        %v562 = vsub.f32 %v274, %v404
        %v563 = vsub.f32 %v275, %v404
        %v564 = vsub.f32 %v276, %v409
        %v565 = vsub.f32 %v277, %v409
        %v566 = vsub.f32 %v278, %v409
        %v567 = vsub.f32 %v279, %v409
        %v568 = vsub.f32 %v280, %v414
        %v569 = vsub.f32 %v281, %v414
        %v570 = vsub.f32 %v282, %v414
        %v571 = vsub.f32 %v283, %v414
        %v572 = vsub.f32 %v284, %v419
        %v573 = vsub.f32 %v285, %v419
        %v574 = vsub.f32 %v286, %v419
        %v575 = vsub.f32 %v287, %v419
        %v576 = vsub.f32 %v288, %v424
        %v577 = vsub.f32 %v289, %v424
        %v578 = vsub.f32 %v290, %v424
        %v579 = vsub.f32 %v291, %v424
        %v580 = vsub.f32 %v292, %v429
        %v581 = vsub.f32 %v293, %v429
        %v582 = vsub.f32 %v294, %v429
        %v583 = vsub.f32 %v295, %v429
        %v584 = vsub.f32 %v296, %v434
        %v585 = vsub.f32 %v297, %v434
        %v586 = vsub.f32 %v298, %v434
        %v587 = vsub.f32 %v299, %v434
        %v588 = vsub.f32 %v300, %v439
        %v589 = vsub.f32 %v301, %v439
        %v590 = vsub.f32 %v302, %v439
        %v591 = vsub.f32 %v303, %v439
        %v592 = vsub.f32 %v304, %v444
        %v593 = vsub.f32 %v305, %v444
        %v594 = vsub.f32 %v306, %v444
        %v595 = vsub.f32 %v307, %v444
        %v596 = vsub.f32 %v308, %v449
        %v597 = vsub.f32 %v309, %v449
        %v598 = vsub.f32 %v310, %v449
        %v599 = vsub.f32 %v311, %v449
        %v600 = vsub.f32 %v312, %v454
        %v601 = vsub.f32 %v313, %v454
        %v602 = vsub.f32 %v314, %v454
        %v603 = vsub.f32 %v315, %v454
        %v604 = vsub.f32 %v316, %v459
        %v605 = vsub.f32 %v317, %v459
        %v606 = vsub.f32 %v318, %v459
        %v607 = vsub.f32 %v319, %v459
        %v608 = vsub.f32 %v320, %v464
        %v609 = vsub.f32 %v321, %v464
        %v610 = vsub.f32 %v322, %v464
        %v611 = vsub.f32 %v323, %v464
        %v612 = vsub.f32 %v324, %v469
        %v613 = vsub.f32 %v325, %v469
        %v614 = vsub.f32 %v326, %v469
        %v615 = vsub.f32 %v327, %v469
        %v616 = vsub.f32 %v328, %v474
        %v617 = vsub.f32 %v329, %v474
        %v618 = vsub.f32 %v330, %v474
        %v619 = vsub.f32 %v331, %v474
        %v620 = vsub.f32 %v332, %v479
        %v621 = vsub.f32 %v333, %v479
        %v622 = vsub.f32 %v334, %v479
        %v623 = vsub.f32 %v335, %v479
        %v624 = vsub.f32 %v336, %v484
        %v625 = vsub.f32 %v337, %v484
        %v626 = vsub.f32 %v338, %v484
        %v627 = vsub.f32 %v339, %v484
        %v628 = vsub.f32 %v340, %v489
        %v629 = vsub.f32 %v341, %v489
        %v630 = vsub.f32 %v342, %v489
        %v631 = vsub.f32 %v343, %v489
        %v632 = vsub.f32 %v344, %v494
        %v633 = vsub.f32 %v345, %v494
        %v634 = vsub.f32 %v346, %v494
        %v635 = vsub.f32 %v347, %v494
        %v636 = vsub.f32 %v348, %v499
        %v637 = vsub.f32 %v349, %v499
        %v638 = vsub.f32 %v350, %v499
        %v639 = vsub.f32 %v351, %v499
        %v640 = vsub.f32 %v352, %v504
        %v641 = vsub.f32 %v353, %v504
        %v642 = vsub.f32 %v354, %v504
        %v643 = vsub.f32 %v355, %v504
        %v644 = vsub.f32 %v356, %v509
        %v645 = vsub.f32 %v357, %v509
        %v646 = vsub.f32 %v358, %v509
        %v647 = vsub.f32 %v359, %v509
        %v648 = vsub.f32 %v360, %v514
        %v649 = vsub.f32 %v361, %v514
        %v650 = vsub.f32 %v362, %v514
        %v651 = vsub.f32 %v363, %v514
        %v652 = vsub.f32 %v364, %v519
        %v653 = vsub.f32 %v365, %v519
        %v654 = vsub.f32 %v366, %v519
        %v655 = vsub.f32 %v367, %v519
        %v656 = vsub.f32 %v368, %v524
        %v657 = vsub.f32 %v369, %v524
        %v658 = vsub.f32 %v370, %v524
        %v659 = vsub.f32 %v371, %v524
        %v660 = vsub.f32 %v372, %v529
        %v661 = vsub.f32 %v373, %v529
        %v662 = vsub.f32 %v374, %v529
        %v663 = vsub.f32 %v375, %v529
        %v664 = vsub.f32 %v376, %v534
        %v665 = vsub.f32 %v377, %v534
        %v666 = vsub.f32 %v378, %v534
        %v667 = vsub.f32 %v379, %v534
        %v668 = vsub.f32 %v380, %v539
        %v669 = vsub.f32 %v381, %v539
        %v670 = vsub.f32 %v382, %v539
        %v671 = vsub.f32 %v383, %v539
        %v672 = vsub.f32 %v384, %v544
        %v673 = vsub.f32 %v385, %v544
        %v674 = vsub.f32 %v386, %v544
        %v675 = vsub.f32 %v387, %v544
        %v676 = vsub.f32 %v388, %v549
        %v677 = vsub.f32 %v389, %v549
        %v678 = vsub.f32 %v390, %v549
        %v679 = vsub.f32 %v391, %v549
        %v680 = vsub.f32 %v392, %v554
        %v681 = vsub.f32 %v393, %v554
        %v682 = vsub.f32 %v394, %v554
        %v683 = vsub.f32 %v395, %v554
        %v684 = vsub.f32 %v396, %v559
        %v685 = vsub.f32 %v397, %v559
        %v686 = vsub.f32 %v398, %v559
        %v687 = vsub.f32 %v399, %v559
        %v688 = vmul.f32 %v560, 1.442695
        %v689 = vpow.pop %v688
        %v690 = vmul.f32 %v561, 1.442695
        %v691 = vpow.pop %v690
        %v692 = vmul.f32 %v562, 1.442695
        %v693 = vpow.pop %v692
        %v694 = vmul.f32 %v563, 1.442695
        %v695 = vpow.pop %v694
        %v696 = vmul.f32 %v564, 1.442695
        %v697 = vpow.pop %v696
        %v698 = vmul.f32 %v565, 1.442695
        %v699 = vpow.pop %v698
        %v700 = vmul.f32 %v566, 1.442695
        %v701 = vpow.pop %v700
        %v702 = vmul.f32 %v567, 1.442695
        %v703 = vpow.pop %v702
        %v704 = vmul.f32 %v568, 1.442695
        %v705 = vpow.pop %v704
        %v706 = vmul.f32 %v569, 1.442695
        %v707 = vpow.pop %v706
        %v708 = vmul.f32 %v570, 1.442695
        %v709 = vpow.pop %v708
        %v710 = vmul.f32 %v571, 1.442695
        %v711 = vpow.pop %v710
        %v712 = vmul.f32 %v572, 1.442695
        %v713 = vpow.pop %v712
        %v714 = vmul.f32 %v573, 1.442695
        %v715 = vpow.pop %v714
        %v716 = vmul.f32 %v574, 1.442695
        %v717 = vpow.pop %v716
        %v718 = vmul.f32 %v575, 1.442695
        %v719 = vpow.pop %v718
        %v720 = vmul.f32 %v576, 1.442695
        %v721 = vpow.pop %v720
        %v722 = vmul.f32 %v577, 1.442695
        %v723 = vpow.pop %v722
        %v724 = vmul.f32 %v578, 1.442695
        %v725 = vpow.pop %v724
        %v726 = vmul.f32 %v579, 1.442695
        %v727 = vpow.pop %v726
        %v728 = vmul.f32 %v580, 1.442695
        %v729 = vpow.pop %v728
        %v730 = vmul.f32 %v581, 1.442695
        %v731 = vpow.pop %v730
        %v732 = vmul.f32 %v582, 1.442695
        %v733 = vpow.pop %v732
        %v734 = vmul.f32 %v583, 1.442695
        %v735 = vpow.pop %v734
        %v736 = vmul.f32 %v584, 1.442695
        %v737 = vpow.pop %v736
        %v738 = vmul.f32 %v585, 1.442695
        %v739 = vpow.pop %v738
        %v740 = vmul.f32 %v586, 1.442695
        %v741 = vpow.pop %v740
        %v742 = vmul.f32 %v587, 1.442695
        %v743 = vpow.pop %v742
        %v744 = vmul.f32 %v588, 1.442695
        %v745 = vpow.pop %v744
        %v746 = vmul.f32 %v589, 1.442695
        %v747 = vpow.pop %v746
        %v748 = vmul.f32 %v590, 1.442695
        %v749 = vpow.pop %v748
        %v750 = vmul.f32 %v591, 1.442695
        %v751 = vpow.pop %v750
        %v752 = vmul.f32 %v592, 1.442695
        %v753 = vpow.pop %v752
        %v754 = vmul.f32 %v593, 1.442695
        %v755 = vpow.pop %v754
        %v756 = vmul.f32 %v594, 1.442695
        %v757 = vpow.pop %v756
        %v758 = vmul.f32 %v595, 1.442695
        %v759 = vpow.pop %v758
        %v760 = vmul.f32 %v596, 1.442695
        %v761 = vpow.pop %v760
        %v762 = vmul.f32 %v597, 1.442695
        %v763 = vpow.pop %v762
        %v764 = vmul.f32 %v598, 1.442695
        %v765 = vpow.pop %v764
        %v766 = vmul.f32 %v599, 1.442695
        %v767 = vpow.pop %v766
        %v768 = vmul.f32 %v600, 1.442695
        %v769 = vpow.pop %v768
        %v770 = vmul.f32 %v601, 1.442695
        %v771 = vpow.pop %v770
        %v772 = vmul.f32 %v602, 1.442695
        %v773 = vpow.pop %v772
        %v774 = vmul.f32 %v603, 1.442695
        %v775 = vpow.pop %v774
        %v776 = vmul.f32 %v604, 1.442695
        %v777 = vpow.pop %v776
        %v778 = vmul.f32 %v605, 1.442695
        %v779 = vpow.pop %v778
        %v780 = vmul.f32 %v606, 1.442695
        %v781 = vpow.pop %v780
        %v782 = vmul.f32 %v607, 1.442695
        %v783 = vpow.pop %v782
        %v784 = vmul.f32 %v608, 1.442695
        %v785 = vpow.pop %v784
        %v786 = vmul.f32 %v609, 1.442695
        %v787 = vpow.pop %v786
        %v788 = vmul.f32 %v610, 1.442695
        %v789 = vpow.pop %v788
        %v790 = vmul.f32 %v611, 1.442695
        %v791 = vpow.pop %v790
        %v792 = vmul.f32 %v612, 1.442695
        %v793 = vpow.pop %v792
        %v794 = vmul.f32 %v613, 1.442695
        %v795 = vpow.pop %v794
        %v796 = vmul.f32 %v614, 1.442695
        %v797 = vpow.pop %v796
        %v798 = vmul.f32 %v615, 1.442695
        %v799 = vpow.pop %v798
        %v800 = vmul.f32 %v616, 1.442695
        %v801 = vpow.pop %v800
        %v802 = vmul.f32 %v617, 1.442695
        %v803 = vpow.pop %v802
        %v804 = vmul.f32 %v618, 1.442695
        %v805 = vpow.pop %v804
        %v806 = vmul.f32 %v619, 1.442695
        %v807 = vpow.pop %v806
        %v808 = vmul.f32 %v620, 1.442695
        %v809 = vpow.pop %v808
        %v810 = vmul.f32 %v621, 1.442695
        %v811 = vpow.pop %v810
        %v812 = vmul.f32 %v622, 1.442695
        %v813 = vpow.pop %v812
        %v814 = vmul.f32 %v623, 1.442695
        %v815 = vpow.pop %v814
        %v816 = vmul.f32 %v624, 1.442695
        %v817 = vpow.pop %v816
        %v818 = vmul.f32 %v625, 1.442695
        %v819 = vpow.pop %v818
        %v820 = vmul.f32 %v626, 1.442695
        %v821 = vpow.pop %v820
        %v822 = vmul.f32 %v627, 1.442695
        %v823 = vpow.pop %v822
        %v824 = vmul.f32 %v628, 1.442695
        %v825 = vpow.pop %v824
        %v826 = vmul.f32 %v629, 1.442695
        %v827 = vpow.pop %v826
        %v828 = vmul.f32 %v630, 1.442695
        %v829 = vpow.pop %v828
        %v830 = vmul.f32 %v631, 1.442695
        %v831 = vpow.pop %v830
        %v832 = vmul.f32 %v632, 1.442695
        %v833 = vpow.pop %v832
        %v834 = vmul.f32 %v633, 1.442695
        %v835 = vpow.pop %v834
        %v836 = vmul.f32 %v634, 1.442695
        %v837 = vpow.pop %v836
        %v838 = vmul.f32 %v635, 1.442695
        %v839 = vpow.pop %v838
        %v840 = vmul.f32 %v636, 1.442695
        %v841 = vpow.pop %v840
        %v842 = vmul.f32 %v637, 1.442695
        %v843 = vpow.pop %v842
        %v844 = vmul.f32 %v638, 1.442695
        %v845 = vpow.pop %v844
        %v846 = vmul.f32 %v639, 1.442695
        %v847 = vpow.pop %v846
        %v848 = vmul.f32 %v640, 1.442695
        %v849 = vpow.pop %v848
        %v850 = vmul.f32 %v641, 1.442695
        %v851 = vpow.pop %v850
        %v852 = vmul.f32 %v642, 1.442695
        %v853 = vpow.pop %v852
        %v854 = vmul.f32 %v643, 1.442695
        %v855 = vpow.pop %v854
        %v856 = vmul.f32 %v644, 1.442695
        %v857 = vpow.pop %v856
        %v858 = vmul.f32 %v645, 1.442695
        %v859 = vpow.pop %v858
        %v860 = vmul.f32 %v646, 1.442695
        %v861 = vpow.pop %v860
        %v862 = vmul.f32 %v647, 1.442695
        %v863 = vpow.pop %v862
        %v864 = vmul.f32 %v648, 1.442695
        %v865 = vpow.pop %v864
        %v866 = vmul.f32 %v649, 1.442695
        %v867 = vpow.pop %v866
        %v868 = vmul.f32 %v650, 1.442695
        %v869 = vpow.pop %v868
        %v870 = vmul.f32 %v651, 1.442695
        %v871 = vpow.pop %v870
        %v872 = vmul.f32 %v652, 1.442695
        %v873 = vpow.pop %v872
        %v874 = vmul.f32 %v653, 1.442695
        %v875 = vpow.pop %v874
        %v876 = vmul.f32 %v654, 1.442695
        %v877 = vpow.pop %v876
        %v878 = vmul.f32 %v655, 1.442695
        %v879 = vpow.pop %v878
        %v880 = vmul.f32 %v656, 1.442695
        %v881 = vpow.pop %v880
        %v882 = vmul.f32 %v657, 1.442695
        %v883 = vpow.pop %v882
        %v884 = vmul.f32 %v658, 1.442695
        %v885 = vpow.pop %v884
        %v886 = vmul.f32 %v659, 1.442695
        %v887 = vpow.pop %v886
        %v888 = vmul.f32 %v660, 1.442695
        %v889 = vpow.pop %v888
        %v890 = vmul.f32 %v661, 1.442695
        %v891 = vpow.pop %v890
        %v892 = vmul.f32 %v662, 1.442695
        %v893 = vpow.pop %v892
        %v894 = vmul.f32 %v663, 1.442695
        %v895 = vpow.pop %v894
        %v896 = vmul.f32 %v664, 1.442695
        %v897 = vpow.pop %v896
        %v898 = vmul.f32 %v665, 1.442695
        %v899 = vpow.pop %v898
        %v900 = vmul.f32 %v666, 1.442695
        %v901 = vpow.pop %v900
        %v902 = vmul.f32 %v667, 1.442695
        %v903 = vpow.pop %v902
        %v904 = vmul.f32 %v668, 1.442695
        %v905 = vpow.pop %v904
        %v906 = vmul.f32 %v669, 1.442695
        %v907 = vpow.pop %v906
        %v908 = vmul.f32 %v670, 1.442695
        %v909 = vpow.pop %v908
        %v910 = vmul.f32 %v671, 1.442695
        %v911 = vpow.pop %v910
        %v912 = vmul.f32 %v672, 1.442695
        %v913 = vpow.pop %v912
        %v914 = vmul.f32 %v673, 1.442695
        %v915 = vpow.pop %v914
        %v916 = vmul.f32 %v674, 1.442695
        %v917 = vpow.pop %v916
        %v918 = vmul.f32 %v675, 1.442695
        %v919 = vpow.pop %v918
        %v920 = vmul.f32 %v676, 1.442695
        %v921 = vpow.pop %v920
        %v922 = vmul.f32 %v677, 1.442695
        %v923 = vpow.pop %v922
        %v924 = vmul.f32 %v678, 1.442695
        %v925 = vpow.pop %v924
        %v926 = vmul.f32 %v679, 1.442695
        %v927 = vpow.pop %v926
        %v928 = vmul.f32 %v680, 1.442695
        %v929 = vpow.pop %v928
        %v930 = vmul.f32 %v681, 1.442695
        %v931 = vpow.pop %v930
        %v932 = vmul.f32 %v682, 1.442695
        %v933 = vpow.pop %v932
        %v934 = vmul.f32 %v683, 1.442695
        %v935 = vpow.pop %v934
        %v936 = vmul.f32 %v684, 1.442695
        %v937 = vpow.pop %v936
        %v938 = vmul.f32 %v685, 1.442695
        %v939 = vpow.pop %v938
        %v940 = vmul.f32 %v686, 1.442695
        %v941 = vpow.pop %v940
        %v942 = vmul.f32 %v687, 1.442695
        %v943 = vpow.pop %v942
        %v944 = vadd.f32 %v689, %v691
        %v945 = vadd.f32 %v944, %v693
        %v946 = vadd.f32 %v945, %v695
        %947 = vadd.xlane.f32.xlu0 %v946
        %v948 = vpop.xlane.xlu0 %947
        %v949 = vadd.f32 %v697, %v699
        %v950 = vadd.f32 %v949, %v701
        %v951 = vadd.f32 %v950, %v703
        %952 = vadd.xlane.f32.xlu0 %v951
        %v953 = vpop.xlane.xlu0 %952
        %v954 = vadd.f32 %v705, %v707
        %v955 = vadd.f32 %v954, %v709
        %v956 = vadd.f32 %v955, %v711
        %957 = vadd.xlane.f32.xlu0 %v956
        %v958 = vpop.xlane.xlu0 %957
        %v959 = vadd.f32 %v713, %v715
        %v960 = vadd.f32 %v959, %v717
        %v961 = vadd.f32 %v960, %v719
        %962 = vadd.xlane.f32.xlu0 %v961
        %v963 = vpop.xlane.xlu0 %962
        %v964 = vadd.f32 %v721, %v723
        %v965 = vadd.f32 %v964, %v725
        %v966 = vadd.f32 %v965, %v727
        %967 = vadd.xlane.f32.xlu0 %v966
        %v968 = vpop.xlane.xlu0 %967
        %v969 = vadd.f32 %v729, %v731
        %v970 = vadd.f32 %v969, %v733
        %v971 = vadd.f32 %v970, %v735
        %972 = vadd.xlane.f32.xlu0 %v971
        %v973 = vpop.xlane.xlu0 %972
        %v974 = vadd.f32 %v737, %v739
        %v975 = vadd.f32 %v974, %v741
        %v976 = vadd.f32 %v975, %v743
        %977 = vadd.xlane.f32.xlu0 %v976
        %v978 = vpop.xlane.xlu0 %977
        %v979 = vadd.f32 %v745, %v747
        %v980 = vadd.f32 %v979, %v749
        %v981 = vadd.f32 %v980, %v751
        %982 = vadd.xlane.f32.xlu0 %v981
        %v983 = vpop.xlane.xlu0 %982
        %v984 = vadd.f32 %v753, %v755
        %v985 = vadd.f32 %v984, %v757
        %v986 = vadd.f32 %v985, %v759
        %987 = vadd.xlane.f32.xlu0 %v986
        %v988 = vpop.xlane.xlu0 %987
        %v989 = vadd.f32 %v761, %v763
        %v990 = vadd.f32 %v989, %v765
        %v991 = vadd.f32 %v990, %v767
        %992 = vadd.xlane.f32.xlu0 %v991
        %v993 = vpop.xlane.xlu0 %992
        %v994 = vadd.f32 %v769, %v771
        %v995 = vadd.f32 %v994, %v773
        %v996 = vadd.f32 %v995, %v775
        %997 = vadd.xlane.f32.xlu0 %v996
        %v998 = vpop.xlane.xlu0 %997
        %v999 = vadd.f32 %v777, %v779
        %v1000 = vadd.f32 %v999, %v781
        %v1001 = vadd.f32 %v1000, %v783
        %1002 = vadd.xlane.f32.xlu0 %v1001
        %v1003 = vpop.xlane.xlu0 %1002
        %v1004 = vadd.f32 %v785, %v787
        %v1005 = vadd.f32 %v1004, %v789
        %v1006 = vadd.f32 %v1005, %v791
        %1007 = vadd.xlane.f32.xlu0 %v1006
        %v1008 = vpop.xlane.xlu0 %1007
        %v1009 = vadd.f32 %v793, %v795
        %v1010 = vadd.f32 %v1009, %v797
        %v1011 = vadd.f32 %v1010, %v799
        %1012 = vadd.xlane.f32.xlu0 %v1011
        %v1013 = vpop.xlane.xlu0 %1012
        %v1014 = vadd.f32 %v801, %v803
        %v1015 = vadd.f32 %v1014, %v805
        %v1016 = vadd.f32 %v1015, %v807
        %1017 = vadd.xlane.f32.xlu0 %v1016
        %v1018 = vpop.xlane.xlu0 %1017
        %v1019 = vadd.f32 %v809, %v811
        %v1020 = vadd.f32 %v1019, %v813
        %v1021 = vadd.f32 %v1020, %v815
        %1022 = vadd.xlane.f32.xlu0 %v1021
        %v1023 = vpop.xlane.xlu0 %1022
        %v1024 = vadd.f32 %v817, %v819
        %v1025 = vadd.f32 %v1024, %v821
        %v1026 = vadd.f32 %v1025, %v823
        %1027 = vadd.xlane.f32.xlu0 %v1026
        %v1028 = vpop.xlane.xlu0 %1027
        %v1029 = vadd.f32 %v825, %v827
        %v1030 = vadd.f32 %v1029, %v829
        %v1031 = vadd.f32 %v1030, %v831
        %1032 = vadd.xlane.f32.xlu0 %v1031
        %v1033 = vpop.xlane.xlu0 %1032
        %v1034 = vadd.f32 %v833, %v835
        %v1035 = vadd.f32 %v1034, %v837
        %v1036 = vadd.f32 %v1035, %v839
        %1037 = vadd.xlane.f32.xlu0 %v1036
        %v1038 = vpop.xlane.xlu0 %1037
        %v1039 = vadd.f32 %v841, %v843
        %v1040 = vadd.f32 %v1039, %v845
        %v1041 = vadd.f32 %v1040, %v847
        %1042 = vadd.xlane.f32.xlu0 %v1041
        %v1043 = vpop.xlane.xlu0 %1042
        %v1044 = vadd.f32 %v849, %v851
        %v1045 = vadd.f32 %v1044, %v853
        %v1046 = vadd.f32 %v1045, %v855
        %1047 = vadd.xlane.f32.xlu0 %v1046
        %v1048 = vpop.xlane.xlu0 %1047
        %v1049 = vadd.f32 %v857, %v859
        %v1050 = vadd.f32 %v1049, %v861
        %v1051 = vadd.f32 %v1050, %v863
        %1052 = vadd.xlane.f32.xlu0 %v1051
        %v1053 = vpop.xlane.xlu0 %1052
        %v1054 = vadd.f32 %v865, %v867
        %v1055 = vadd.f32 %v1054, %v869
        %v1056 = vadd.f32 %v1055, %v871
        %1057 = vadd.xlane.f32.xlu0 %v1056
        %v1058 = vpop.xlane.xlu0 %1057
        %v1059 = vadd.f32 %v873, %v875
        %v1060 = vadd.f32 %v1059, %v877
        %v1061 = vadd.f32 %v1060, %v879
        %1062 = vadd.xlane.f32.xlu0 %v1061
        %v1063 = vpop.xlane.xlu0 %1062
        %v1064 = vadd.f32 %v881, %v883
        %v1065 = vadd.f32 %v1064, %v885
        %v1066 = vadd.f32 %v1065, %v887
        %1067 = vadd.xlane.f32.xlu0 %v1066
        %v1068 = vpop.xlane.xlu0 %1067
        %v1069 = vadd.f32 %v889, %v891
        %v1070 = vadd.f32 %v1069, %v893
        %v1071 = vadd.f32 %v1070, %v895
        %1072 = vadd.xlane.f32.xlu0 %v1071
        %v1073 = vpop.xlane.xlu0 %1072
        %v1074 = vadd.f32 %v897, %v899
        %v1075 = vadd.f32 %v1074, %v901
        %v1076 = vadd.f32 %v1075, %v903
        %1077 = vadd.xlane.f32.xlu0 %v1076
        %v1078 = vpop.xlane.xlu0 %1077
        %v1079 = vadd.f32 %v905, %v907
        %v1080 = vadd.f32 %v1079, %v909
        %v1081 = vadd.f32 %v1080, %v911
        %1082 = vadd.xlane.f32.xlu0 %v1081
        %v1083 = vpop.xlane.xlu0 %1082
        %v1084 = vadd.f32 %v913, %v915
        %v1085 = vadd.f32 %v1084, %v917
        %v1086 = vadd.f32 %v1085, %v919
        %1087 = vadd.xlane.f32.xlu0 %v1086
        %v1088 = vpop.xlane.xlu0 %1087
        %v1089 = vadd.f32 %v921, %v923
        %v1090 = vadd.f32 %v1089, %v925
        %v1091 = vadd.f32 %v1090, %v927
        %1092 = vadd.xlane.f32.xlu0 %v1091
        %v1093 = vpop.xlane.xlu0 %1092
        %v1094 = vadd.f32 %v929, %v931
        %v1095 = vadd.f32 %v1094, %v933
        %v1096 = vadd.f32 %v1095, %v935
        %1097 = vadd.xlane.f32.xlu0 %v1096
        %v1098 = vpop.xlane.xlu0 %1097
        %v1099 = vadd.f32 %v937, %v939
        %v1100 = vadd.f32 %v1099, %v941
        %v1101 = vadd.f32 %v1100, %v943
        %1102 = vadd.xlane.f32.xlu0 %v1101
        %v1103 = vpop.xlane.xlu0 %1102
        %v1104 = vlog2.pop %v948
        %v1105 = vmul.f32 %v1104, 0.6931472
        %v1106 = vlog2.pop %v953
        %v1107 = vmul.f32 %v1106, 0.6931472
        %v1108 = vlog2.pop %v958
        %v1109 = vmul.f32 %v1108, 0.6931472
        %v1110 = vlog2.pop %v963
        %v1111 = vmul.f32 %v1110, 0.6931472
        %v1112 = vlog2.pop %v968
        %v1113 = vmul.f32 %v1112, 0.6931472
        %v1114 = vlog2.pop %v973
        %v1115 = vmul.f32 %v1114, 0.6931472
        %v1116 = vlog2.pop %v978
        %v1117 = vmul.f32 %v1116, 0.6931472
        %v1118 = vlog2.pop %v983
        %v1119 = vmul.f32 %v1118, 0.6931472
        %v1120 = vlog2.pop %v988
        %v1121 = vmul.f32 %v1120, 0.6931472
        %v1122 = vlog2.pop %v993
        %v1123 = vmul.f32 %v1122, 0.6931472
        %v1124 = vlog2.pop %v998
        %v1125 = vmul.f32 %v1124, 0.6931472
        %v1126 = vlog2.pop %v1003
        %v1127 = vmul.f32 %v1126, 0.6931472
        %v1128 = vlog2.pop %v1008
        %v1129 = vmul.f32 %v1128, 0.6931472
        %v1130 = vlog2.pop %v1013
        %v1131 = vmul.f32 %v1130, 0.6931472
        %v1132 = vlog2.pop %v1018
        %v1133 = vmul.f32 %v1132, 0.6931472
        %v1134 = vlog2.pop %v1023
        %v1135 = vmul.f32 %v1134, 0.6931472
        %v1136 = vlog2.pop %v1028
        %v1137 = vmul.f32 %v1136, 0.6931472
        %v1138 = vlog2.pop %v1033
        %v1139 = vmul.f32 %v1138, 0.6931472
        %v1140 = vlog2.pop %v1038
        %v1141 = vmul.f32 %v1140, 0.6931472
        %v1142 = vlog2.pop %v1043
        %v1143 = vmul.f32 %v1142, 0.6931472
        %v1144 = vlog2.pop %v1048
        %v1145 = vmul.f32 %v1144, 0.6931472
        %v1146 = vlog2.pop %v1053
        %v1147 = vmul.f32 %v1146, 0.6931472
        %v1148 = vlog2.pop %v1058
        %v1149 = vmul.f32 %v1148, 0.6931472
        %v1150 = vlog2.pop %v1063
        %v1151 = vmul.f32 %v1150, 0.6931472
        %v1152 = vlog2.pop %v1068
        %v1153 = vmul.f32 %v1152, 0.6931472
        %v1154 = vlog2.pop %v1073
        %v1155 = vmul.f32 %v1154, 0.6931472
        %v1156 = vlog2.pop %v1078
        %v1157 = vmul.f32 %v1156, 0.6931472
        %v1158 = vlog2.pop %v1083
        %v1159 = vmul.f32 %v1158, 0.6931472
        %v1160 = vlog2.pop %v1088
        %v1161 = vmul.f32 %v1160, 0.6931472
        %v1162 = vlog2.pop %v1093
        %v1163 = vmul.f32 %v1162, 0.6931472
        %v1164 = vlog2.pop %v1098
        %v1165 = vmul.f32 %v1164, 0.6931472
        %v1166 = vlog2.pop %v1103
        %v1167 = vmul.f32 %v1166, 0.6931472
        %v1168 = vadd.f32 %v1105, %v404
        %v1169 = vadd.f32 %v1107, %v409
        %v1170 = vadd.f32 %v1109, %v414
        %v1171 = vadd.f32 %v1111, %v419
        %v1172 = vadd.f32 %v1113, %v424
        %v1173 = vadd.f32 %v1115, %v429
        %v1174 = vadd.f32 %v1117, %v434
        %v1175 = vadd.f32 %v1119, %v439
        %v1176 = vadd.f32 %v1121, %v444
        %v1177 = vadd.f32 %v1123, %v449
        %v1178 = vadd.f32 %v1125, %v454
        %v1179 = vadd.f32 %v1127, %v459
        %v1180 = vadd.f32 %v1129, %v464
        %v1181 = vadd.f32 %v1131, %v469
        %v1182 = vadd.f32 %v1133, %v474
        %v1183 = vadd.f32 %v1135, %v479
        %v1184 = vadd.f32 %v1137, %v484
        %v1185 = vadd.f32 %v1139, %v489
        %v1186 = vadd.f32 %v1141, %v494
        %v1187 = vadd.f32 %v1143, %v499
        %v1188 = vadd.f32 %v1145, %v504
        %v1189 = vadd.f32 %v1147, %v509
        %v1190 = vadd.f32 %v1149, %v514
        %v1191 = vadd.f32 %v1151, %v519
        %v1192 = vadd.f32 %v1153, %v524
        %v1193 = vadd.f32 %v1155, %v529
        %v1194 = vadd.f32 %v1157, %v534
        %v1195 = vadd.f32 %v1159, %v539
        %v1196 = vadd.f32 %v1161, %v544
        %v1197 = vadd.f32 %v1163, %v549
        %v1198 = vadd.f32 %v1165, %v554
        %v1199 = vadd.f32 %v1167, %v559
        %v1200 = vld [vmem:[%s203] sm:$0xff]
        %v1201 = vld [vmem:[%s203 + $0x8] sm:$0xff]
        %v1202 = vld [vmem:[%s203 + $0x10] sm:$0xff]
        %v1203 = vld [vmem:[%s203 + $0x18] sm:$0xff]
        %v1204 = vld [vmem:[%s203 + $0x20] sm:$0xff]
        %v1205 = vld [vmem:[%s203 + $0x28] sm:$0xff]
        %v1206 = vld [vmem:[%s203 + $0x30] sm:$0xff]
        %v1207 = vld [vmem:[%s203 + $0x38] sm:$0xff]
        %v1208 = vld [vmem:[%s203 + $0x40] sm:$0xff]
        %v1209 = vld [vmem:[%s203 + $0x48] sm:$0xff]
        %v1210 = vld [vmem:[%s203 + $0x50] sm:$0xff]
        %v1211 = vld [vmem:[%s203 + $0x58] sm:$0xff]
        %v1212 = vld [vmem:[%s203 + $0x60] sm:$0xff]
        %v1213 = vld [vmem:[%s203 + $0x68] sm:$0xff]
        %v1214 = vld [vmem:[%s203 + $0x70] sm:$0xff]
        %v1215 = vld [vmem:[%s203 + $0x78] sm:$0xff]
        %v1216 = vld [vmem:[%s203 + $0x80] sm:$0xff]
        %v1217 = vld [vmem:[%s203 + $0x88] sm:$0xff]
        %v1218 = vld [vmem:[%s203 + $0x90] sm:$0xff]
        %v1219 = vld [vmem:[%s203 + $0x98] sm:$0xff]
        %v1220 = vld [vmem:[%s203 + $0xa0] sm:$0xff]
        %v1221 = vld [vmem:[%s203 + $0xa8] sm:$0xff]
        %v1222 = vld [vmem:[%s203 + $0xb0] sm:$0xff]
        %v1223 = vld [vmem:[%s203 + $0xb8] sm:$0xff]
        %v1224 = vld [vmem:[%s203 + $0xc0] sm:$0xff]
        %v1225 = vld [vmem:[%s203 + $0xc8] sm:$0xff]
        %v1226 = vld [vmem:[%s203 + $0xd0] sm:$0xff]
        %v1227 = vld [vmem:[%s203 + $0xd8] sm:$0xff]
        %v1228 = vld [vmem:[%s203 + $0xe0] sm:$0xff]
        %v1229 = vld [vmem:[%s203 + $0xe8] sm:$0xff]
        %v1230 = vld [vmem:[%s203 + $0xf0] sm:$0xff]
        %v1231 = vld [vmem:[%s203 + $0xf8] sm:$0xff]
        %v1232 = vld [vmem:[%s203 + $0x100] sm:$0xff]
        %v1233 = vld [vmem:[%s203 + $0x108] sm:$0xff]
        %v1234 = vld [vmem:[%s203 + $0x110] sm:$0xff]
        %v1235 = vld [vmem:[%s203 + $0x118] sm:$0xff]
        %v1236 = vld [vmem:[%s203 + $0x120] sm:$0xff]
        %v1237 = vld [vmem:[%s203 + $0x128] sm:$0xff]
        %v1238 = vld [vmem:[%s203 + $0x130] sm:$0xff]
        %v1239 = vld [vmem:[%s203 + $0x138] sm:$0xff]
        %v1240 = vld [vmem:[%s203 + $0x140] sm:$0xff]
        %v1241 = vld [vmem:[%s203 + $0x148] sm:$0xff]
        %v1242 = vld [vmem:[%s203 + $0x150] sm:$0xff]
        %v1243 = vld [vmem:[%s203 + $0x158] sm:$0xff]
        %v1244 = vld [vmem:[%s203 + $0x160] sm:$0xff]
        %v1245 = vld [vmem:[%s203 + $0x168] sm:$0xff]
        %v1246 = vld [vmem:[%s203 + $0x170] sm:$0xff]
        %v1247 = vld [vmem:[%s203 + $0x178] sm:$0xff]
        %v1248 = vld [vmem:[%s203 + $0x180] sm:$0xff]
        %v1249 = vld [vmem:[%s203 + $0x188] sm:$0xff]
        %v1250 = vld [vmem:[%s203 + $0x190] sm:$0xff]
        %v1251 = vld [vmem:[%s203 + $0x198] sm:$0xff]
        %v1252 = vld [vmem:[%s203 + $0x1a0] sm:$0xff]
        %v1253 = vld [vmem:[%s203 + $0x1a8] sm:$0xff]
        %v1254 = vld [vmem:[%s203 + $0x1b0] sm:$0xff]
        %v1255 = vld [vmem:[%s203 + $0x1b8] sm:$0xff]
        %v1256 = vld [vmem:[%s203 + $0x1c0] sm:$0xff]
        %v1257 = vld [vmem:[%s203 + $0x1c8] sm:$0xff]
        %v1258 = vld [vmem:[%s203 + $0x1d0] sm:$0xff]
        %v1259 = vld [vmem:[%s203 + $0x1d8] sm:$0xff]
        %v1260 = vld [vmem:[%s203 + $0x1e0] sm:$0xff]
        %v1261 = vld [vmem:[%s203 + $0x1e8] sm:$0xff]
        %v1262 = vld [vmem:[%s203 + $0x1f0] sm:$0xff]
        %v1263 = vld [vmem:[%s203 + $0x1f8] sm:$0xff]
        %v1264 = vlaneseq
        %v1265 = vshrl.u32 %v1264, 7
        %v1266 = vadd.s32 %v1265, 8
        %v1267 = vadd.s32 %v1265, 16
        %v1268 = vadd.s32 %v1265, 24
        %v1269 = vadd.s32 %v1265, 32
        %v1270 = vadd.s32 %v1265, 40
        %v1271 = vadd.s32 %v1265, 48
        %v1272 = vadd.s32 %v1265, 56
        %v1273 = vadd.s32 %v1265, 64
        %v1274 = vadd.s32 %v1265, 72
        %v1275 = vadd.s32 %v1265, 80
        %v1276 = vadd.s32 %v1265, 88
        %v1277 = vadd.s32 %v1265, 96
        %v1278 = vadd.s32 %v1265, 104
        %v1279 = vadd.s32 %v1265, 112
        %v1280 = vadd.s32 %v1265, 120
        %v1281 = vadd.s32 %v1265, 128
        %v1282 = vadd.s32 %v1265, 136
        %v1283 = vadd.s32 %v1265, 144
        %v1284 = vadd.s32 %v1265, 152
        %v1285 = vadd.s32 %v1265, 160
        %v1286 = vadd.s32 %v1265, 168
        %v1287 = vadd.s32 %v1265, 176
        %v1288 = vadd.s32 %v1265, 184
        %v1289 = vadd.s32 %v1265, 192
        %v1290 = vadd.s32 %v1265, 200
        %v1291 = vadd.s32 %v1265, 208
        %v1292 = vadd.s32 %v1265, 216
        %v1293 = vadd.s32 %v1265, 224
        %v1294 = vadd.s32 %v1265, 232
        %v1295 = vadd.s32 %v1265, 240
        %v1296 = vadd.s32 %v1265, 248
        %v1297 = vlaneseq
        %v1298 = vand.u32 %v1297, 127
        %v1299 = vadd.s32 %v1298, 128
        %vm1300 = vcmp.eq.s32.totalorder %v1265, %v1298
        %vm1301 = vcmp.eq.s32.totalorder %v1265, %v1299
        %vm1302 = vcmp.eq.s32.totalorder %v1266, %v1298
        %vm1303 = vcmp.eq.s32.totalorder %v1266, %v1299
        %vm1304 = vcmp.eq.s32.totalorder %v1267, %v1298
        %vm1305 = vcmp.eq.s32.totalorder %v1267, %v1299
        %vm1306 = vcmp.eq.s32.totalorder %v1268, %v1298
        %vm1307 = vcmp.eq.s32.totalorder %v1268, %v1299
        %vm1308 = vcmp.eq.s32.totalorder %v1269, %v1298
        %vm1309 = vcmp.eq.s32.totalorder %v1269, %v1299
        %vm1310 = vcmp.eq.s32.totalorder %v1270, %v1298
        %vm1311 = vcmp.eq.s32.totalorder %v1270, %v1299
        %vm1312 = vcmp.eq.s32.totalorder %v1271, %v1298
        %vm1313 = vcmp.eq.s32.totalorder %v1271, %v1299
        %vm1314 = vcmp.eq.s32.totalorder %v1272, %v1298
        %vm1315 = vcmp.eq.s32.totalorder %v1272, %v1299
        %vm1316 = vcmp.eq.s32.totalorder %v1273, %v1298
        %vm1317 = vcmp.eq.s32.totalorder %v1273, %v1299
        %vm1318 = vcmp.eq.s32.totalorder %v1274, %v1298
        %vm1319 = vcmp.eq.s32.totalorder %v1274, %v1299
        %vm1320 = vcmp.eq.s32.totalorder %v1275, %v1298
        %vm1321 = vcmp.eq.s32.totalorder %v1275, %v1299
        %vm1322 = vcmp.eq.s32.totalorder %v1276, %v1298
        %vm1323 = vcmp.eq.s32.totalorder %v1276, %v1299
        %vm1324 = vcmp.eq.s32.totalorder %v1277, %v1298
        %vm1325 = vcmp.eq.s32.totalorder %v1277, %v1299
        %vm1326 = vcmp.eq.s32.totalorder %v1278, %v1298
        %vm1327 = vcmp.eq.s32.totalorder %v1278, %v1299
        %vm1328 = vcmp.eq.s32.totalorder %v1279, %v1298
        %vm1329 = vcmp.eq.s32.totalorder %v1279, %v1299
        %vm1330 = vcmp.eq.s32.totalorder %v1280, %v1298
        %vm1331 = vcmp.eq.s32.totalorder %v1280, %v1299
        %vm1332 = vcmp.eq.s32.totalorder %v1281, %v1298
        %vm1333 = vcmp.eq.s32.totalorder %v1281, %v1299
        %vm1334 = vcmp.eq.s32.totalorder %v1282, %v1298
        %vm1335 = vcmp.eq.s32.totalorder %v1282, %v1299
        %vm1336 = vcmp.eq.s32.totalorder %v1283, %v1298
        %vm1337 = vcmp.eq.s32.totalorder %v1283, %v1299
        %vm1338 = vcmp.eq.s32.totalorder %v1284, %v1298
        %vm1339 = vcmp.eq.s32.totalorder %v1284, %v1299
        %vm1340 = vcmp.eq.s32.totalorder %v1285, %v1298
        %vm1341 = vcmp.eq.s32.totalorder %v1285, %v1299
        %vm1342 = vcmp.eq.s32.totalorder %v1286, %v1298
        %vm1343 = vcmp.eq.s32.totalorder %v1286, %v1299
        %vm1344 = vcmp.eq.s32.totalorder %v1287, %v1298
        %vm1345 = vcmp.eq.s32.totalorder %v1287, %v1299
        %vm1346 = vcmp.eq.s32.totalorder %v1288, %v1298
        %vm1347 = vcmp.eq.s32.totalorder %v1288, %v1299
        %vm1348 = vcmp.eq.s32.totalorder %v1289, %v1298
        %vm1349 = vcmp.eq.s32.totalorder %v1289, %v1299
        %vm1350 = vcmp.eq.s32.totalorder %v1290, %v1298
        %vm1351 = vcmp.eq.s32.totalorder %v1290, %v1299
        %vm1352 = vcmp.eq.s32.totalorder %v1291, %v1298
        %vm1353 = vcmp.eq.s32.totalorder %v1291, %v1299
        %vm1354 = vcmp.eq.s32.totalorder %v1292, %v1298
        %vm1355 = vcmp.eq.s32.totalorder %v1292, %v1299
        %vm1356 = vcmp.eq.s32.totalorder %v1293, %v1298
        %vm1357 = vcmp.eq.s32.totalorder %v1293, %v1299
        %vm1358 = vcmp.eq.s32.totalorder %v1294, %v1298
        %vm1359 = vcmp.eq.s32.totalorder %v1294, %v1299
        %vm1360 = vcmp.eq.s32.totalorder %v1295, %v1298
        %vm1361 = vcmp.eq.s32.totalorder %v1295, %v1299
        %vm1362 = vcmp.eq.s32.totalorder %v1296, %v1298
        %vm1363 = vcmp.eq.s32.totalorder %v1296, %v1299
        %v1364 = vsel %vm1300, %v1200, 0.0
        %v1365 = vsel %vm1301, %v1201, 0.0
        %v1366 = vsel %vm1302, %v1202, 0.0
        %v1367 = vsel %vm1303, %v1203, 0.0
        %v1368 = vsel %vm1304, %v1204, 0.0
        %v1369 = vsel %vm1305, %v1205, 0.0
        %v1370 = vsel %vm1306, %v1206, 0.0
        %v1371 = vsel %vm1307, %v1207, 0.0
        %v1372 = vsel %vm1308, %v1208, 0.0
        %v1373 = vsel %vm1309, %v1209, 0.0
        %v1374 = vsel %vm1310, %v1210, 0.0
        %v1375 = vsel %vm1311, %v1211, 0.0
        %v1376 = vsel %vm1312, %v1212, 0.0
        %v1377 = vsel %vm1313, %v1213, 0.0
        %v1378 = vsel %vm1314, %v1214, 0.0
        %v1379 = vsel %vm1315, %v1215, 0.0
        %v1380 = vsel %vm1316, %v1216, 0.0
        %v1381 = vsel %vm1317, %v1217, 0.0
        %v1382 = vsel %vm1318, %v1218, 0.0
        %v1383 = vsel %vm1319, %v1219, 0.0
        %v1384 = vsel %vm1320, %v1220, 0.0
        %v1385 = vsel %vm1321, %v1221, 0.0
        %v1386 = vsel %vm1322, %v1222, 0.0
        %v1387 = vsel %vm1323, %v1223, 0.0
        %v1388 = vsel %vm1324, %v1224, 0.0
        %v1389 = vsel %vm1325, %v1225, 0.0
        %v1390 = vsel %vm1326, %v1226, 0.0
        %v1391 = vsel %vm1327, %v1227, 0.0
        %v1392 = vsel %vm1328, %v1228, 0.0
        %v1393 = vsel %vm1329, %v1229, 0.0
        %v1394 = vsel %vm1330, %v1230, 0.0
        %v1395 = vsel %vm1331, %v1231, 0.0
        %v1396 = vsel %vm1332, %v1232, 0.0
        %v1397 = vsel %vm1333, %v1233, 0.0
        %v1398 = vsel %vm1334, %v1234, 0.0
        %v1399 = vsel %vm1335, %v1235, 0.0
        %v1400 = vsel %vm1336, %v1236, 0.0
        %v1401 = vsel %vm1337, %v1237, 0.0
        %v1402 = vsel %vm1338, %v1238, 0.0
        %v1403 = vsel %vm1339, %v1239, 0.0
        %v1404 = vsel %vm1340, %v1240, 0.0
        %v1405 = vsel %vm1341, %v1241, 0.0
        %v1406 = vsel %vm1342, %v1242, 0.0
        %v1407 = vsel %vm1343, %v1243, 0.0
        %v1408 = vsel %vm1344, %v1244, 0.0
        %v1409 = vsel %vm1345, %v1245, 0.0
        %v1410 = vsel %vm1346, %v1246, 0.0
        %v1411 = vsel %vm1347, %v1247, 0.0
        %v1412 = vsel %vm1348, %v1248, 0.0
        %v1413 = vsel %vm1349, %v1249, 0.0
        %v1414 = vsel %vm1350, %v1250, 0.0
        %v1415 = vsel %vm1351, %v1251, 0.0
        %v1416 = vsel %vm1352, %v1252, 0.0
        %v1417 = vsel %vm1353, %v1253, 0.0
        %v1418 = vsel %vm1354, %v1254, 0.0
        %v1419 = vsel %vm1355, %v1255, 0.0
        %v1420 = vsel %vm1356, %v1256, 0.0
        %v1421 = vsel %vm1357, %v1257, 0.0
        %v1422 = vsel %vm1358, %v1258, 0.0
        %v1423 = vsel %vm1359, %v1259, 0.0
        %v1424 = vsel %vm1360, %v1260, 0.0
        %v1425 = vsel %vm1361, %v1261, 0.0
        %v1426 = vsel %vm1362, %v1262, 0.0
        %v1427 = vsel %vm1363, %v1263, 0.0
        %v1428 = vadd.f32 %v1364, %v1365
        %1429 = vadd.xlane.f32.xlu0 %v1428
        %v1430 = vpop.xlane.xlu0 %1429
        %v1431 = vadd.f32 %v1366, %v1367
        %1432 = vadd.xlane.f32.xlu0 %v1431
        %v1433 = vpop.xlane.xlu0 %1432
        %v1434 = vadd.f32 %v1368, %v1369
        %1435 = vadd.xlane.f32.xlu0 %v1434
        %v1436 = vpop.xlane.xlu0 %1435
        %v1437 = vadd.f32 %v1370, %v1371
        %1438 = vadd.xlane.f32.xlu0 %v1437
        %v1439 = vpop.xlane.xlu0 %1438
        %v1440 = vadd.f32 %v1372, %v1373
        %1441 = vadd.xlane.f32.xlu0 %v1440
        %v1442 = vpop.xlane.xlu0 %1441
        %v1443 = vadd.f32 %v1374, %v1375
        %1444 = vadd.xlane.f32.xlu0 %v1443
        %v1445 = vpop.xlane.xlu0 %1444
        %v1446 = vadd.f32 %v1376, %v1377
        %1447 = vadd.xlane.f32.xlu0 %v1446
        %v1448 = vpop.xlane.xlu0 %1447
        %v1449 = vadd.f32 %v1378, %v1379
        %1450 = vadd.xlane.f32.xlu0 %v1449
        %v1451 = vpop.xlane.xlu0 %1450
        %v1452 = vadd.f32 %v1380, %v1381
        %1453 = vadd.xlane.f32.xlu0 %v1452
        %v1454 = vpop.xlane.xlu0 %1453
        %v1455 = vadd.f32 %v1382, %v1383
        %1456 = vadd.xlane.f32.xlu0 %v1455
        %v1457 = vpop.xlane.xlu0 %1456
        %v1458 = vadd.f32 %v1384, %v1385
        %1459 = vadd.xlane.f32.xlu0 %v1458
        %v1460 = vpop.xlane.xlu0 %1459
        %v1461 = vadd.f32 %v1386, %v1387
        %1462 = vadd.xlane.f32.xlu0 %v1461
        %v1463 = vpop.xlane.xlu0 %1462
        %v1464 = vadd.f32 %v1388, %v1389
        %1465 = vadd.xlane.f32.xlu0 %v1464
        %v1466 = vpop.xlane.xlu0 %1465
        %v1467 = vadd.f32 %v1390, %v1391
        %1468 = vadd.xlane.f32.xlu0 %v1467
        %v1469 = vpop.xlane.xlu0 %1468
        %v1470 = vadd.f32 %v1392, %v1393
        %1471 = vadd.xlane.f32.xlu0 %v1470
        %v1472 = vpop.xlane.xlu0 %1471
        %v1473 = vadd.f32 %v1394, %v1395
        %1474 = vadd.xlane.f32.xlu0 %v1473
        %v1475 = vpop.xlane.xlu0 %1474
        %v1476 = vadd.f32 %v1396, %v1397
        %1477 = vadd.xlane.f32.xlu0 %v1476
        %v1478 = vpop.xlane.xlu0 %1477
        %v1479 = vadd.f32 %v1398, %v1399
        %1480 = vadd.xlane.f32.xlu0 %v1479
        %v1481 = vpop.xlane.xlu0 %1480
        %v1482 = vadd.f32 %v1400, %v1401
        %1483 = vadd.xlane.f32.xlu0 %v1482
        %v1484 = vpop.xlane.xlu0 %1483
        %v1485 = vadd.f32 %v1402, %v1403
        %1486 = vadd.xlane.f32.xlu0 %v1485
        %v1487 = vpop.xlane.xlu0 %1486
        %v1488 = vadd.f32 %v1404, %v1405
        %1489 = vadd.xlane.f32.xlu0 %v1488
        %v1490 = vpop.xlane.xlu0 %1489
        %v1491 = vadd.f32 %v1406, %v1407
        %1492 = vadd.xlane.f32.xlu0 %v1491
        %v1493 = vpop.xlane.xlu0 %1492
        %v1494 = vadd.f32 %v1408, %v1409
        %1495 = vadd.xlane.f32.xlu0 %v1494
        %v1496 = vpop.xlane.xlu0 %1495
        %v1497 = vadd.f32 %v1410, %v1411
        %1498 = vadd.xlane.f32.xlu0 %v1497
        %v1499 = vpop.xlane.xlu0 %1498
        %v1500 = vadd.f32 %v1412, %v1413
        %1501 = vadd.xlane.f32.xlu0 %v1500
        %v1502 = vpop.xlane.xlu0 %1501
        %v1503 = vadd.f32 %v1414, %v1415
        %1504 = vadd.xlane.f32.xlu0 %v1503
        %v1505 = vpop.xlane.xlu0 %1504
        %v1506 = vadd.f32 %v1416, %v1417
        %1507 = vadd.xlane.f32.xlu0 %v1506
        %v1508 = vpop.xlane.xlu0 %1507
        %v1509 = vadd.f32 %v1418, %v1419
        %1510 = vadd.xlane.f32.xlu0 %v1509
        %v1511 = vpop.xlane.xlu0 %1510
        %v1512 = vadd.f32 %v1420, %v1421
        %1513 = vadd.xlane.f32.xlu0 %v1512
        %v1514 = vpop.xlane.xlu0 %1513
        %v1515 = vadd.f32 %v1422, %v1423
        %1516 = vadd.xlane.f32.xlu0 %v1515
        %v1517 = vpop.xlane.xlu0 %1516
        %v1518 = vadd.f32 %v1424, %v1425
        %1519 = vadd.xlane.f32.xlu0 %v1518
        %v1520 = vpop.xlane.xlu0 %1519
        %v1521 = vadd.f32 %v1426, %v1427
        %1522 = vadd.xlane.f32.xlu0 %v1521
        %v1523 = vpop.xlane.xlu0 %1522
        %v1524 = vld [vmem:[#allocation2] sm:$0xff]
        %v1525 = vld [vmem:[#allocation2 + $0x8] sm:$0xff]
        %v1526 = vld [vmem:[#allocation2 + $0x10] sm:$0xff]
        %v1527 = vld [vmem:[#allocation2 + $0x18] sm:$0xff]
        %v1528 = vld [vmem:[#allocation2 + $0x20] sm:$0xff]
        %v1529 = vld [vmem:[#allocation2 + $0x28] sm:$0xff]
        %v1530 = vld [vmem:[#allocation2 + $0x30] sm:$0xff]
        %v1531 = vld [vmem:[#allocation2 + $0x38] sm:$0xff]
        %v1532 = vld [vmem:[#allocation2 + $0x40] sm:$0xff]
        %v1533 = vld [vmem:[#allocation2 + $0x48] sm:$0xff]
        %v1534 = vld [vmem:[#allocation2 + $0x50] sm:$0xff]
        %v1535 = vld [vmem:[#allocation2 + $0x58] sm:$0xff]
        %v1536 = vld [vmem:[#allocation2 + $0x60] sm:$0xff]
        %v1537 = vld [vmem:[#allocation2 + $0x68] sm:$0xff]
        %v1538 = vld [vmem:[#allocation2 + $0x70] sm:$0xff]
        %v1539 = vld [vmem:[#allocation2 + $0x78] sm:$0xff]
        %v1540 = vld [vmem:[#allocation2 + $0x80] sm:$0xff]
        %v1541 = vld [vmem:[#allocation2 + $0x88] sm:$0xff]
        %v1542 = vld [vmem:[#allocation2 + $0x90] sm:$0xff]
        %v1543 = vld [vmem:[#allocation2 + $0x98] sm:$0xff]
        %v1544 = vld [vmem:[#allocation2 + $0xa0] sm:$0xff]
        %v1545 = vld [vmem:[#allocation2 + $0xa8] sm:$0xff]
        %v1546 = vld [vmem:[#allocation2 + $0xb0] sm:$0xff]
        %v1547 = vld [vmem:[#allocation2 + $0xb8] sm:$0xff]
        %v1548 = vld [vmem:[#allocation2 + $0xc0] sm:$0xff]
        %v1549 = vld [vmem:[#allocation2 + $0xc8] sm:$0xff]
        %v1550 = vld [vmem:[#allocation2 + $0xd0] sm:$0xff]
        %v1551 = vld [vmem:[#allocation2 + $0xd8] sm:$0xff]
        %v1552 = vld [vmem:[#allocation2 + $0xe0] sm:$0xff]
        %v1553 = vld [vmem:[#allocation2 + $0xe8] sm:$0xff]
        %v1554 = vld [vmem:[#allocation2 + $0xf0] sm:$0xff]
        %v1555 = vld [vmem:[#allocation2 + $0xf8] sm:$0xff]
        %v1556 = vsub.f32 %v1168, %v1430
        %v1557 = vsub.f32 %v1169, %v1433
        %v1558 = vsub.f32 %v1170, %v1436
        %v1559 = vsub.f32 %v1171, %v1439
        %v1560 = vsub.f32 %v1172, %v1442
        %v1561 = vsub.f32 %v1173, %v1445
        %v1562 = vsub.f32 %v1174, %v1448
        %v1563 = vsub.f32 %v1175, %v1451
        %v1564 = vsub.f32 %v1176, %v1454
        %v1565 = vsub.f32 %v1177, %v1457
        %v1566 = vsub.f32 %v1178, %v1460
        %v1567 = vsub.f32 %v1179, %v1463
        %v1568 = vsub.f32 %v1180, %v1466
        %v1569 = vsub.f32 %v1181, %v1469
        %v1570 = vsub.f32 %v1182, %v1472
        %v1571 = vsub.f32 %v1183, %v1475
        %v1572 = vsub.f32 %v1184, %v1478
        %v1573 = vsub.f32 %v1185, %v1481
        %v1574 = vsub.f32 %v1186, %v1484
        %v1575 = vsub.f32 %v1187, %v1487
        %v1576 = vsub.f32 %v1188, %v1490
        %v1577 = vsub.f32 %v1189, %v1493
        %v1578 = vsub.f32 %v1190, %v1496
        %v1579 = vsub.f32 %v1191, %v1499
        %v1580 = vsub.f32 %v1192, %v1502
        %v1581 = vsub.f32 %v1193, %v1505
        %v1582 = vsub.f32 %v1194, %v1508
        %v1583 = vsub.f32 %v1195, %v1511
        %v1584 = vsub.f32 %v1196, %v1514
        %v1585 = vsub.f32 %v1197, %v1517
        %v1586 = vsub.f32 %v1198, %v1520
        %v1587 = vsub.f32 %v1199, %v1523
        %v1588 = vadd.f32 %v1524, %v1556
        %v1589 = vadd.f32 %v1525, %v1557
        %v1590 = vadd.f32 %v1526, %v1558
        %v1591 = vadd.f32 %v1527, %v1559
        %v1592 = vadd.f32 %v1528, %v1560
        %v1593 = vadd.f32 %v1529, %v1561
        %v1594 = vadd.f32 %v1530, %v1562
        %v1595 = vadd.f32 %v1531, %v1563
        %v1596 = vadd.f32 %v1532, %v1564
        %v1597 = vadd.f32 %v1533, %v1565
        %v1598 = vadd.f32 %v1534, %v1566
        %v1599 = vadd.f32 %v1535, %v1567
        %v1600 = vadd.f32 %v1536, %v1568
        %v1601 = vadd.f32 %v1537, %v1569
        %v1602 = vadd.f32 %v1538, %v1570
        %v1603 = vadd.f32 %v1539, %v1571
        %v1604 = vadd.f32 %v1540, %v1572
        %v1605 = vadd.f32 %v1541, %v1573
        %v1606 = vadd.f32 %v1542, %v1574
        %v1607 = vadd.f32 %v1543, %v1575
        %v1608 = vadd.f32 %v1544, %v1576
        %v1609 = vadd.f32 %v1545, %v1577
        %v1610 = vadd.f32 %v1546, %v1578
        %v1611 = vadd.f32 %v1547, %v1579
        %v1612 = vadd.f32 %v1548, %v1580
        %v1613 = vadd.f32 %v1549, %v1581
        %v1614 = vadd.f32 %v1550, %v1582
        %v1615 = vadd.f32 %v1551, %v1583
        %v1616 = vadd.f32 %v1552, %v1584
        %v1617 = vadd.f32 %v1553, %v1585
        %v1618 = vadd.f32 %v1554, %v1586
        %v1619 = vadd.f32 %v1555, %v1587
        %vm1620 = vcmask 7168
        %1621 = vst.msk [vmem:[#allocation2] sm:$0xff] %vm1620, %v1588
        %1622 = vst.msk [vmem:[#allocation2 + $0x8] sm:$0xff] %vm1620, %v1589
        %1623 = vst.msk [vmem:[#allocation2 + $0x10] sm:$0xff] %vm1620, %v1590
        %1624 = vst.msk [vmem:[#allocation2 + $0x18] sm:$0xff] %vm1620, %v1591
        %1625 = vst.msk [vmem:[#allocation2 + $0x20] sm:$0xff] %vm1620, %v1592
        %1626 = vst.msk [vmem:[#allocation2 + $0x28] sm:$0xff] %vm1620, %v1593
        %1627 = vst.msk [vmem:[#allocation2 + $0x30] sm:$0xff] %vm1620, %v1594
        %1628 = vst.msk [vmem:[#allocation2 + $0x38] sm:$0xff] %vm1620, %v1595
        %1629 = vst.msk [vmem:[#allocation2 + $0x40] sm:$0xff] %vm1620, %v1596
        %1630 = vst.msk [vmem:[#allocation2 + $0x48] sm:$0xff] %vm1620, %v1597
        %1631 = vst.msk [vmem:[#allocation2 + $0x50] sm:$0xff] %vm1620, %v1598
        %1632 = vst.msk [vmem:[#allocation2 + $0x58] sm:$0xff] %vm1620, %v1599
        %1633 = vst.msk [vmem:[#allocation2 + $0x60] sm:$0xff] %vm1620, %v1600
        %1634 = vst.msk [vmem:[#allocation2 + $0x68] sm:$0xff] %vm1620, %v1601
        %1635 = vst.msk [vmem:[#allocation2 + $0x70] sm:$0xff] %vm1620, %v1602
        %1636 = vst.msk [vmem:[#allocation2 + $0x78] sm:$0xff] %vm1620, %v1603
        %1637 = vst.msk [vmem:[#allocation2 + $0x80] sm:$0xff] %vm1620, %v1604
        %1638 = vst.msk [vmem:[#allocation2 + $0x88] sm:$0xff] %vm1620, %v1605
        %1639 = vst.msk [vmem:[#allocation2 + $0x90] sm:$0xff] %vm1620, %v1606
        %1640 = vst.msk [vmem:[#allocation2 + $0x98] sm:$0xff] %vm1620, %v1607
        %1641 = vst.msk [vmem:[#allocation2 + $0xa0] sm:$0xff] %vm1620, %v1608
        %1642 = vst.msk [vmem:[#allocation2 + $0xa8] sm:$0xff] %vm1620, %v1609
        %1643 = vst.msk [vmem:[#allocation2 + $0xb0] sm:$0xff] %vm1620, %v1610
        %1644 = vst.msk [vmem:[#allocation2 + $0xb8] sm:$0xff] %vm1620, %v1611
        %1645 = vst.msk [vmem:[#allocation2 + $0xc0] sm:$0xff] %vm1620, %v1612
        %1646 = vst.msk [vmem:[#allocation2 + $0xc8] sm:$0xff] %vm1620, %v1613
        %1647 = vst.msk [vmem:[#allocation2 + $0xd0] sm:$0xff] %vm1620, %v1614
        %1648 = vst.msk [vmem:[#allocation2 + $0xd8] sm:$0xff] %vm1620, %v1615
        %1649 = vst.msk [vmem:[#allocation2 + $0xe0] sm:$0xff] %vm1620, %v1616
        %1650 = vst.msk [vmem:[#allocation2 + $0xe8] sm:$0xff] %vm1620, %v1617
        %1651 = vst.msk [vmem:[#allocation2 + $0xf0] sm:$0xff] %vm1620, %v1618
        %1652 = vst.msk [vmem:[#allocation2 + $0xf8] sm:$0xff] %vm1620, %v1619
        // Predicated region
        $region41: #{tpu_custom_call.1} parent=27 // pred_check
          %p1653 = pneg %p235
        $region42: #{tpu_custom_call.1} parent=27 // pred_check_branch
          %1655 = sbr.rel (%p1653) target = $region44
        $region43: #{tpu_custom_call.1} parent=27 // pred_region
          %v1656 = vld [vmem:[#allocation2] sm:$0xff]
          %v1657 = vld [vmem:[#allocation2 + $0x8] sm:$0xff]
          %v1658 = vld [vmem:[#allocation2 + $0x10] sm:$0xff]
          %v1659 = vld [vmem:[#allocation2 + $0x18] sm:$0xff]
          %v1660 = vld [vmem:[#allocation2 + $0x20] sm:$0xff]
          %v1661 = vld [vmem:[#allocation2 + $0x28] sm:$0xff]
          %v1662 = vld [vmem:[#allocation2 + $0x30] sm:$0xff]
          %v1663 = vld [vmem:[#allocation2 + $0x38] sm:$0xff]
          %v1664 = vld [vmem:[#allocation2 + $0x40] sm:$0xff]
          %v1665 = vld [vmem:[#allocation2 + $0x48] sm:$0xff]
          %v1666 = vld [vmem:[#allocation2 + $0x50] sm:$0xff]
          %v1667 = vld [vmem:[#allocation2 + $0x58] sm:$0xff]
          %v1668 = vld [vmem:[#allocation2 + $0x60] sm:$0xff]
          %v1669 = vld [vmem:[#allocation2 + $0x68] sm:$0xff]
          %v1670 = vld [vmem:[#allocation2 + $0x70] sm:$0xff]
          %v1671 = vld [vmem:[#allocation2 + $0x78] sm:$0xff]
          %v1672 = vld [vmem:[#allocation2 + $0x80] sm:$0xff]
          %v1673 = vld [vmem:[#allocation2 + $0x88] sm:$0xff]
          %v1674 = vld [vmem:[#allocation2 + $0x90] sm:$0xff]
          %v1675 = vld [vmem:[#allocation2 + $0x98] sm:$0xff]
          %v1676 = vld [vmem:[#allocation2 + $0xa0] sm:$0xff]
          %v1677 = vld [vmem:[#allocation2 + $0xa8] sm:$0xff]
          %v1678 = vld [vmem:[#allocation2 + $0xb0] sm:$0xff]
          %v1679 = vld [vmem:[#allocation2 + $0xb8] sm:$0xff]
          %v1680 = vld [vmem:[#allocation2 + $0xc0] sm:$0xff]
          %v1681 = vld [vmem:[#allocation2 + $0xc8] sm:$0xff]
          %v1682 = vld [vmem:[#allocation2 + $0xd0] sm:$0xff]
          %v1683 = vld [vmem:[#allocation2 + $0xd8] sm:$0xff]
          %v1684 = vld [vmem:[#allocation2 + $0xe0] sm:$0xff]
          %v1685 = vld [vmem:[#allocation2 + $0xe8] sm:$0xff]
          %v1686 = vld [vmem:[#allocation2 + $0xf0] sm:$0xff]
          %v1687 = vld [vmem:[#allocation2 + $0xf8] sm:$0xff]
          %v1688 = vsel %vm1620, %v1656, 0.0
          %v1689 = vsel %vm1620, %v1657, 0.0
          %v1690 = vadd.f32 %v1688, %v1689
          %v1691 = vsel %vm1620, %v1658, 0.0
          %v1692 = vadd.f32 %v1690, %v1691
          %v1693 = vsel %vm1620, %v1659, 0.0
          %v1694 = vadd.f32 %v1692, %v1693
          %v1695 = vsel %vm1620, %v1660, 0.0
          %v1696 = vadd.f32 %v1694, %v1695
          %v1697 = vsel %vm1620, %v1661, 0.0
          %v1698 = vadd.f32 %v1696, %v1697
          %v1699 = vsel %vm1620, %v1662, 0.0
          %v1700 = vadd.f32 %v1698, %v1699
          %v1701 = vsel %vm1620, %v1663, 0.0
          %v1702 = vadd.f32 %v1700, %v1701
          %v1703 = vsel %vm1620, %v1664, 0.0
          %v1704 = vadd.f32 %v1702, %v1703
          %v1705 = vsel %vm1620, %v1665, 0.0
          %v1706 = vadd.f32 %v1704, %v1705
          %v1707 = vsel %vm1620, %v1666, 0.0
          %v1708 = vadd.f32 %v1706, %v1707
          %v1709 = vsel %vm1620, %v1667, 0.0
          %v1710 = vadd.f32 %v1708, %v1709
          %v1711 = vsel %vm1620, %v1668, 0.0
          %v1712 = vadd.f32 %v1710, %v1711
          %v1713 = vsel %vm1620, %v1669, 0.0
          %v1714 = vadd.f32 %v1712, %v1713
          %v1715 = vsel %vm1620, %v1670, 0.0
          %v1716 = vadd.f32 %v1714, %v1715
          %v1717 = vsel %vm1620, %v1671, 0.0
          %v1718 = vadd.f32 %v1716, %v1717
          %v1719 = vsel %vm1620, %v1672, 0.0
          %v1720 = vadd.f32 %v1718, %v1719
          %v1721 = vsel %vm1620, %v1673, 0.0
          %v1722 = vadd.f32 %v1720, %v1721
          %v1723 = vsel %vm1620, %v1674, 0.0
          %v1724 = vadd.f32 %v1722, %v1723
          %v1725 = vsel %vm1620, %v1675, 0.0
          %v1726 = vadd.f32 %v1724, %v1725
          %v1727 = vsel %vm1620, %v1676, 0.0
          %v1728 = vadd.f32 %v1726, %v1727
          %v1729 = vsel %vm1620, %v1677, 0.0
          %v1730 = vadd.f32 %v1728, %v1729
          %v1731 = vsel %vm1620, %v1678, 0.0
          %v1732 = vadd.f32 %v1730, %v1731
          %v1733 = vsel %vm1620, %v1679, 0.0
          %v1734 = vadd.f32 %v1732, %v1733
          %v1735 = vsel %vm1620, %v1680, 0.0
          %v1736 = vadd.f32 %v1734, %v1735
          %v1737 = vsel %vm1620, %v1681, 0.0
          %v1738 = vadd.f32 %v1736, %v1737
          %v1739 = vsel %vm1620, %v1682, 0.0
          %v1740 = vadd.f32 %v1738, %v1739
          %v1741 = vsel %vm1620, %v1683, 0.0
          %v1742 = vadd.f32 %v1740, %v1741
          %v1743 = vsel %vm1620, %v1684, 0.0
          %v1744 = vadd.f32 %v1742, %v1743
          %v1745 = vsel %vm1620, %v1685, 0.0
          %v1746 = vadd.f32 %v1744, %v1745
          %v1747 = vsel %vm1620, %v1686, 0.0
          %v1748 = vadd.f32 %v1746, %v1747
          %v1749 = vsel %vm1620, %v1687, 0.0
          %v1750 = vadd.f32 %v1748, %v1749
          %1751 = vadd.xlane.f32.xlu0 %v1750
          %v1752 = vpop.xlane.xlu0 %1751
          %v1753 = vrot.slane %v1752, 4
          %v1754 = vadd.f32 %v1752, %v1753
          %v1755 = vrot.slane %v1754, 2
          %v1756 = vadd.f32 %v1754, %v1755
          %v1757 = vrot.slane %v1756, 1
          %v1758 = vadd.f32 %v1756, %v1757
          %s1759 = vtos %v1758
          %v1760 = vstv %s1759
          %v1761 = vadd.f32 %v1760, 0.0
          %1762 = vst [vmem:[%s229] sm:$0xff] %v1761
        $region44: #{tpu_custom_call.1} parent=27 // pred_fallthru
          _
        %s1763 = sand.u32 %s100, 1
        %s1764 = scalar_lea.sflag [#allocation5], %s1763
        %s1765 = sand.u32 %s100, 1
        %s1766 = smul.addr %s1765, 8
        %s1767 = scalar_lea.vmem [#allocation8], %s1766
        // Predicated region
        $region45: #{tpu_custom_call.1} parent=27 // pred_check
          %p1768 = pneg %p110
        $region46: #{tpu_custom_call.1} parent=27 // pred_check_branch
          %1770 = sbr.rel (%p1768) target = $region48
        $region47: #{tpu_custom_call.1} parent=27 // pred_region
          %1772 = vsyncadd %s1764, 0
          %s1773 = smul.addr %s26, 8
          %s1774 = scalar_lea.hbm %s2, %s1773
          %s1776 = sshll.u32 %s1767, 4
          %s1777 = int_to_ptr.vmem [resolvable:$true] %s1776
          %s1778 = sshll.u32 %s1774, 4
          %s1779 = int_to_ptr.hbm [resolvable:$true] %s1778
          %1781 = dma.vmem_to_hbm [thread:$0]  %s1777, 128, %s1779, %s1764
        $region48: #{tpu_custom_call.1} parent=27 // pred_fallthru
          _
      $region28: #{tpu_custom_call.1} parent=5 // pred_fallthru
        _
      %p1782 = scmp.le.s32.totalorder 2, %s17
      // Predicated region
      $region49: #{tpu_custom_call.1} parent=5 // pred_check
        %p1783 = pneg %p1782
      $region50: #{tpu_custom_call.1} parent=5 // pred_check_branch
        %1785 = sbr.rel (%p1783) target = $region52
      $region51: #{tpu_custom_call.1} parent=5 // pred_region
        %s1786 = ssub.s32 %s17, 2
        // Predicated region
        $region53: #{tpu_custom_call.1} parent=51 // pred_check
          %p1787 = pneg %p116
        $region54: #{tpu_custom_call.1} parent=51 // pred_check_branch
          %1789 = sbr.rel (%p1787) target = $region56
        $region55: #{tpu_custom_call.1} parent=51 // pred_region
          %s1790 = sand.u32 %s101, 1
          %s1791 = scalar_lea.sflag [#allocation5], %s1790
          %s1792 = sand.u32 %s101, 1
          %s1793 = smul.addr %s1792, 8
          %s1794 = scalar_lea.vmem [#allocation8], %s1793
          %1796 = dma.done %s1791, 128
        $region56: #{tpu_custom_call.1} parent=51 // pred_fallthru
          _
      $region52: #{tpu_custom_call.1} parent=5 // pred_fallthru
        _
    $region6: #{tpu_custom_call.1} parent=1 // loop_footer
      %s21 = sadd.s32 1, %s17
    $region7: #{tpu_custom_call.1} parent=1 // loop_footer_branch
      %16 = sbr.rel target = $region3
    $region8: #{tpu_custom_call.1} parent=1 // loop_exit
      _
    %1797 = vsyncpa [#allocation4], 1
    %s1798 = scalar_lea.sflag [#allocation4], 1
    %1799 = vsyncpa %s1798, 1
    %1800 = vsyncpa [#allocation7], 1
    %s1801 = scalar_lea.sflag [#allocation7], 1
    %1802 = vsyncpa %s1801, 1
    %1803 = vsyncpa [#allocation5], 1
    %s1804 = scalar_lea.sflag [#allocation5], 1
    %1805 = vsyncpa %s1804, 1

</llo_original>
